<compile_context>
chip_gen: v7x
topology: tpu7x:2x2x1
jax: 0.10.0
libtpu: 0.0.40
codegen_flags: <defaults>
</compile_context>

<pallas_src>
import numpy as np
import jax
import jax.numpy as jnp
from jax import lax
from jax.experimental import pallas as pl
from jax.experimental.pallas import tpu as pltpu  # noqa: F401  (TPU backend)

# --- static config: AGCRNCell(model_name, p1, node_num, dim_in, dim_out, cheb_k, embed_dim)
MODEL_NAME = "AGCRN"   # TODO(synk): model_name / p1 select AVWGCN variants not present in the
P1 = 0.0               #             given source; the standard AVWGCN formulation is implemented.
NODE_NUM = 16
DIM_IN = 4
HIDDEN = 32            # dim_out / hidden_dim
CHEB_K = 3
EMBED_DIM = 8
BATCH = 2

CIN = DIM_IN + HIDDEN             # channels entering both graph convolutions (36)
BN = BATCH * NODE_NUM             # batch folded into the matmul M dimension (32)
KPAD = 128                        # padded contraction depth: K*CIN (108) + 1 bias lane -> 128
GROUP = 128                       # output lane-group width (one vreg of lanes)
D_PER_GROUP = GROUP // HIDDEN     # embedding dims packed per 128-lane group (4)
N_GROUPS = EMBED_DIM // D_PER_GROUP   # 128-lane weight/acc groups per 32-wide output (2)
OUT_PAD = 128                     # lane-dense padded output width

assert CHEB_K * CIN + 1 <= KPAD
assert GROUP % HIDDEN == 0 and EMBED_DIM % D_PER_GROUP == 0

F32 = jnp.float32


# ---------------------------------------------------------------------------
# Single fused kernel: adjacency + gate gconv + candidate gconv + GRU combine.
# ---------------------------------------------------------------------------
def _agcrn_cell_kernel(x_ref, st_ref, e_ref, ebc_ref, mask_ref,
                       wz_ref, wr_ref, wu_ref, h_ref):
    x = x_ref[...]          # (BN, DIM_IN)
    st = st_ref[...]        # (BN, HIDDEN)
    e = e_ref[...]          # (BN, EMBED_DIM)          batch-tiled node embeddings (f32)
    ebc = ebc_ref[...]      # (BN, EMBED_DIM*HIDDEN)   per-d 32-lane broadcast of e (f32)

    # ---- fused block-diagonal adjacency: softmax(relu(E E^T)) per batch block ----
    logits = lax.dot_general(e, e, (((1,), (1,)), ((), ())),
                             preferred_element_type=F32)            # tiled E @ E^T  (BN, BN)
    logits = jnp.maximum(logits, 0.0)
    logits = jnp.where(mask_ref[...] > 0.5, logits, F32(-1e30))     # off-block -> ~ -inf
    logits = logits - jnp.max(logits, axis=-1, keepdims=True)
    p = jnp.exp(logits)                                             # exact 0 off-block
    adj = p / jnp.sum(p, axis=-1, keepdims=True)
    # TODO(synk): the block-diagonal (BN,BN) support only scales to small B*N; real AGCRN
    #             sizes need per-batch (N,N) supports or a tiled/grid formulation.

    # constant-1 lane (selects the bias row of the fused weights) + zero pad up to KPAD
    npad = KPAD - CHEB_K * CIN
    biaspad = (lax.broadcasted_iota(jnp.int32, (BN, npad), 1) == 0).astype(F32)

    def build_cat(h_part):
        # cat = [xh | S_1 xh | ... | S_{K-1} xh | 1 | 0...]  (BN, KPAD); Chebyshev recursion
        # applied directly to the (BN, CIN) values, never to stacked support matrices.
        xh = jnp.concatenate([x, h_part], axis=1)                   # (BN, CIN)
        pieces = [xh, jnp.dot(adj, xh, preferred_element_type=F32)]
        for _ in range(2, CHEB_K):
            pieces.append(2.0 * jnp.dot(adj, pieces[-1], preferred_element_type=F32)
                          - pieces[-2])
        pieces.append(biaspad)
        return jnp.concatenate(pieces, axis=1)                      # (BN, KPAD)

    def dconv(cat, w_ref):
        # One K=128-deep matmul per 128-lane group (4 packed embedding dims each), the
        # embedding contraction as whole-vreg FMAs into a single (BN, 128) tile, then one
        # 4-way lane fold.  Weights are bf16 in VMEM and upcast just before the MXU.
        acc = None
        for g in range(N_GROUPS):
            wg = w_ref[:, g * GROUP:(g + 1) * GROUP].astype(F32)
            term = (jnp.dot(cat, wg, preferred_element_type=F32)
                    * ebc[:, g * GROUP:(g + 1) * GROUP])
            acc = term if acc is None else acc + term
        out = acc[:, 0:HIDDEN]
        for c in range(1, D_PER_GROUP):
            out = out + acc[:, c * HIDDEN:(c + 1) * HIDDEN]
        return out                                                  # (BN, HIDDEN)

    cat_g = build_cat(st)                        # gate graph-conv input
    z = jax.nn.sigmoid(dconv(cat_g, wz_ref))     # z, r, hc all lane-aligned at [0, HIDDEN)
    r = jax.nn.sigmoid(dconv(cat_g, wr_ref))
    cat_u = build_cat(z * st)                    # candidate graph-conv input
    hc = jnp.tanh(dconv(cat_u, wu_ref))
    h = r * st + (1.0 - r) * hc                  # pure-VPU GRU combine

    # lane-dense store: pad to 128 lanes (unmasked vst); the wrapper slices it back.
    h_ref[...] = jnp.pad(h, ((0, 0), (0, OUT_PAD - HIDDEN)))


# ---------------------------------------------------------------------------
# Wrapper (one-time parameter layout prep + single pallas_call)
# ---------------------------------------------------------------------------
def _pack_weight(w_pool, b_pool):
    # (D, K, CIN, O), (D, O) -> fused (KPAD, D*O) bf16 weight:
    #   row  k*CIN + i -> w_pool[d, k, i, o]   (matches cat lane k*CIN + i)
    #   row  K*CIN     -> b_pool[d, o]         (matches the constant-1 cat lane)
    #   col  d*O + o   -> D_PER_GROUP embedding dims packed per 128-lane group
    d, k, c, o = w_pool.shape
    w = jnp.transpose(w_pool, (1, 2, 0, 3)).reshape(k * c, d * o)
    bias_row = b_pool.reshape(1, d * o)
    pad = jnp.zeros((KPAD - k * c - 1, d * o), w_pool.dtype)
    return jnp.concatenate([w, bias_row, pad], axis=0).astype(jnp.bfloat16)


def agcrn_cell_pallas(x, state, node_embeddings, wg_pool, bg_pool, wu_pool, bu_pool):
    B, N, din = x.shape
    H = state.shape[-1]
    D = node_embeddings.shape[-1]
    K = wg_pool.shape[1]
    assert (B, N, din, H, D, K) == (BATCH, NODE_NUM, DIM_IN, HIDDEN, EMBED_DIM, CHEB_K)

    # --- one-time parameter / layout prep (setup glue, done once in practice) ---
    wz = _pack_weight(wg_pool[..., :H], bg_pool[:, :H])   # (128, 256) bf16   gate z columns
    wr = _pack_weight(wg_pool[..., H:], bg_pool[:, H:])   # (128, 256) bf16   gate r columns
    wu = _pack_weight(wu_pool, bu_pool)                   # (128, 256) bf16   candidate
    e_flat = jnp.tile(node_embeddings, (B, 1)).astype(jnp.float32)            # (BN, D)
    ebc = jnp.repeat(e_flat, H, axis=1)                   # (BN, D*H) per-d 32-lane broadcast
    bid = jnp.arange(B * N, dtype=jnp.int32) // N
    mask = (bid[:, None] == bid[None, :]).astype(jnp.float32)                 # (BN, BN)

    x_flat = x.reshape(B * N, din).astype(jnp.float32)
    st_flat = state.reshape(B * N, H).astype(jnp.float32)

    # TODO(synk): when this cell is driven over a timestep scan, wrap in a grid=(T,) with
    #             constant-index weight BlockSpecs so the fused weights stay VMEM-resident.
    h_pad = pl.pallas_call(
        _agcrn_cell_kernel,
        out_shape=jax.ShapeDtypeStruct((B * N, OUT_PAD), jnp.float32),
    )(x_flat, st_flat, e_flat, ebc, mask, wz, wr, wu)
    return h_pad[:, :H].reshape(B, N, H)


# ---------------------------------------------------------------------------
# Pure-JAX reference (mirrors the PyTorch module exactly)
# ---------------------------------------------------------------------------
def _avwgcn_ref(x, emb, w_pool, b_pool, cheb_k):
    n = emb.shape[0]
    a = jax.nn.softmax(jax.nn.relu(emb @ emb.T), axis=1)
    sset = [jnp.eye(n, dtype=x.dtype), a]
    for _ in range(2, cheb_k):
        sset.append(2.0 * a @ sset[-1] - sset[-2])
    supports = jnp.stack(sset, axis=0)                                    # (K, N, N)
    weights = jnp.einsum('nd,dkio->nkio', emb, w_pool)                    # (N, K, Cin, O)
    bias = emb @ b_pool                                                   # (N, O)
    x_g = jnp.einsum('knm,bmc->bknc', supports, x).transpose(0, 2, 1, 3)  # (B, N, K, Cin)
    return jnp.einsum('bnki,nkio->bno', x_g, weights) + bias


def agcrn_cell_ref(x, state, emb, wg_pool, bg_pool, wu_pool, bu_pool):
    xs = jnp.concatenate([x, state], axis=-1)
    z_r = jax.nn.sigmoid(_avwgcn_ref(xs, emb, wg_pool, bg_pool, CHEB_K))
    z, r = z_r[..., :HIDDEN], z_r[..., HIDDEN:]
    cand = jnp.concatenate([x, z * state], axis=-1)
    hc = jnp.tanh(_avwgcn_ref(cand, emb, wu_pool, bu_pool, CHEB_K))
    return r * state + (1.0 - r) * hc


# ---------------------------------------------------------------------------
if __name__ == "__main__":
    key = jax.random.PRNGKey(0)
    ks = jax.random.split(key, 7)
    node_embeddings = 0.5 * jax.random.normal(ks[0], (NODE_NUM, EMBED_DIM), jnp.float32)
    wg_pool = 0.1 * jax.random.normal(ks[1], (EMBED_DIM, CHEB_K, CIN, 2 * HIDDEN), jnp.float32)
    bg_pool = 0.1 * jax.random.normal(ks[2], (EMBED_DIM, 2 * HIDDEN), jnp.float32)
    wu_pool = 0.1 * jax.random.normal(ks[3], (EMBED_DIM, CHEB_K, CIN, HIDDEN), jnp.float32)
    bu_pool = 0.1 * jax.random.normal(ks[4], (EMBED_DIM, HIDDEN), jnp.float32)
    x = jax.random.normal(ks[5], (BATCH, NODE_NUM, DIM_IN), jnp.float32)
    state = 0.5 * jax.random.normal(ks[6], (BATCH, NODE_NUM, HIDDEN), jnp.float32)

    h = agcrn_cell_pallas(x, state, node_embeddings, wg_pool, bg_pool, wu_pool, bu_pool)
    h = jax.block_until_ready(h)

    h_ref = jax.block_until_ready(
        agcrn_cell_ref(x, state, node_embeddings, wg_pool, bg_pool, wu_pool, bu_pool)
    )
    np.testing.assert_allclose(np.asarray(h), np.asarray(h_ref), rtol=5e-3, atol=5e-3)

    print("KERNEL_OK")
</pallas_src>

<mosaic_0001>
module attributes {stable_mosaic.version = 11 : i64} {
  func.func @_agcrn_cell_kernel(%arg0: memref<32x4xf32, #tpu.memory_space<vmem>>, %arg1: memref<32x32xf32, #tpu.memory_space<vmem>>, %arg2: memref<32x8xf32, #tpu.memory_space<vmem>>, %arg3: memref<32x256xf32, #tpu.memory_space<vmem>>, %arg4: memref<32x32xf32, #tpu.memory_space<vmem>>, %arg5: memref<128x256xbf16, #tpu.memory_space<vmem>>, %arg6: memref<128x256xbf16, #tpu.memory_space<vmem>>, %arg7: memref<128x256xbf16, #tpu.memory_space<vmem>>, %arg8: memref<32x128xf32, #tpu.memory_space<vmem>>) attributes {dimension_semantics = [], scalar_prefetch = 0 : i64, scratch_operands = 0 : i64, tpu.core_type = #tpu.core_type<tc>} {
    %c0 = arith.constant 0 : index
    %c0_0 = arith.constant 0 : index
    %0 = vector.load %arg0[%c0, %c0_0] : memref<32x4xf32, #tpu.memory_space<vmem>>, vector<32x4xf32>
    %c0_1 = arith.constant 0 : index
    %c0_2 = arith.constant 0 : index
    %1 = vector.load %arg1[%c0_1, %c0_2] : memref<32x32xf32, #tpu.memory_space<vmem>>, vector<32x32xf32>
    %c0_3 = arith.constant 0 : index
    %c0_4 = arith.constant 0 : index
    %2 = vector.load %arg2[%c0_3, %c0_4] : memref<32x8xf32, #tpu.memory_space<vmem>>, vector<32x8xf32>
    %c0_5 = arith.constant 0 : index
    %c0_6 = arith.constant 0 : index
    %3 = vector.load %arg3[%c0_5, %c0_6] : memref<32x256xf32, #tpu.memory_space<vmem>>, vector<32x256xf32>
    %cst = arith.constant dense<0.000000e+00> : vector<32x32xf32>
    %4 = tpu.matmul %2, %2, %cst {dimension_numbers = #tpu.dot_dimension_numbers<[1], [1], [0], [0], [0, 0, 1, 0], [], []>} : vector<32x8xf32>, vector<32x8xf32>, vector<32x32xf32> -> vector<32x32xf32>
    %cst_7 = arith.constant 0.000000e+00 : f32
    %5 = vector.broadcast %cst_7 : f32 to vector<32x32xf32>
    %6 = arith.maximumf %4, %5 : vector<32x32xf32>
    %c0_8 = arith.constant 0 : index
    %c0_9 = arith.constant 0 : index
    %7 = vector.load %arg4[%c0_8, %c0_9] : memref<32x32xf32, #tpu.memory_space<vmem>>, vector<32x32xf32>
    %cst_10 = arith.constant 5.000000e-01 : f32
    %8 = vector.broadcast %cst_10 : f32 to vector<32x32xf32>
    %9 = arith.cmpf ogt, %7, %8 : vector<32x32xf32>
    %cst_11 = arith.constant -1.000000e+30 : f32
    %10 = vector.broadcast %cst_11 : f32 to vector<32x32xf32>
    %11 = arith.select %9, %6, %10 : vector<32x32xi1>, vector<32x32xf32>
    %cst_12 = arith.constant dense<0xFF800000> : vector<32xf32>
    %12 = vector.multi_reduction <maximumf>, %11, %cst_12 [1] : vector<32x32xf32> to vector<32xf32>
    %13 = vector.shape_cast %12 : vector<32xf32> to vector<32x1xf32>
    %14 = vector.broadcast %13 : vector<32x1xf32> to vector<32x32xf32>
    %15 = arith.subf %11, %14 : vector<32x32xf32>
    %16 = math.exp %15 : vector<32x32xf32>
    %cst_13 = arith.constant dense<0.000000e+00> : vector<32xf32>
    %17 = vector.multi_reduction <add>, %16, %cst_13 [1] : vector<32x32xf32> to vector<32xf32>
    %18 = vector.shape_cast %17 : vector<32xf32> to vector<32x1xf32>
    %19 = vector.broadcast %18 : vector<32x1xf32> to vector<32x32xf32>
    %20 = arith.divf %16, %19 : vector<32x32xf32>
    %21 = tpu.iota {dimensions = array<i32: 1>} : vector<32x20xi32>
    %c0_i32 = arith.constant 0 : i32
    %22 = vector.broadcast %c0_i32 : i32 to vector<32x20xi32>
    %23 = arith.cmpi eq, %21, %22 : vector<32x20xi32>
    %24 = arith.extui %23 : vector<32x20xi1> to vector<32x20xi32>
    %25 = arith.sitofp %24 : vector<32x20xi32> to vector<32x20xf32>
    %26 = tpu.concatenate %0, %1 in 1 : vector<32x4xf32>, vector<32x32xf32> -> vector<32x36xf32>
    %cst_14 = arith.constant dense<0.000000e+00> : vector<32x36xf32>
    %27 = tpu.matmul %20, %26, %cst_14 {dimension_numbers = #tpu.dot_dimension_numbers<[1], [0], [0], [1], [0, 0, 1, 1], [], []>} : vector<32x32xf32>, vector<32x36xf32>, vector<32x36xf32> -> vector<32x36xf32>
    %cst_15 = arith.constant dense<0.000000e+00> : vector<32x36xf32>
    %28 = tpu.matmul %20, %27, %cst_15 {dimension_numbers = #tpu.dot_dimension_numbers<[1], [0], [0], [1], [0, 0, 1, 1], [], []>} : vector<32x32xf32>, vector<32x36xf32>, vector<32x36xf32> -> vector<32x36xf32>
    %cst_16 = arith.constant 2.000000e+00 : f32
    %29 = vector.broadcast %cst_16 : f32 to vector<32x36xf32>
    %30 = arith.mulf %29, %28 : vector<32x36xf32>
    %31 = arith.subf %30, %26 : vector<32x36xf32>
    %32 = tpu.concatenate %26, %27, %31, %25 in 1 : vector<32x36xf32>, vector<32x36xf32>, vector<32x36xf32>, vector<32x20xf32> -> vector<32x128xf32>
    %c0_17 = arith.constant 0 : index
    %c0_18 = arith.constant 0 : index
    %33 = vector.load %arg5[%c0_17, %c0_18] : memref<128x256xbf16, #tpu.memory_space<vmem>>, vector<128x128xbf16>
    %34 = arith.extf %33 : vector<128x128xbf16> to vector<128x128xf32>
    %cst_19 = arith.constant dense<0.000000e+00> : vector<32x128xf32>
    %35 = tpu.matmul %32, %34, %cst_19 {dimension_numbers = #tpu.dot_dimension_numbers<[1], [0], [0], [1], [0, 0, 1, 1], [], []>} : vector<32x128xf32>, vector<128x128xf32>, vector<32x128xf32> -> vector<32x128xf32>
    %36 = vector.extract_strided_slice %3 {offsets = [0, 0], sizes = [32, 128], strides = [1, 1]} : vector<32x256xf32> to vector<32x128xf32>
    %37 = arith.mulf %35, %36 : vector<32x128xf32>
    %c0_20 = arith.constant 0 : index
    %c128 = arith.constant 128 : index
    %38 = vector.load %arg5[%c0_20, %c128] : memref<128x256xbf16, #tpu.memory_space<vmem>>, vector<128x128xbf16>
    %39 = arith.extf %38 : vector<128x128xbf16> to vector<128x128xf32>
    %cst_21 = arith.constant dense<0.000000e+00> : vector<32x128xf32>
    %40 = tpu.matmul %32, %39, %cst_21 {dimension_numbers = #tpu.dot_dimension_numbers<[1], [0], [0], [1], [0, 0, 1, 1], [], []>} : vector<32x128xf32>, vector<128x128xf32>, vector<32x128xf32> -> vector<32x128xf32>
    %41 = vector.extract_strided_slice %3 {offsets = [0, 128], sizes = [32, 128], strides = [1, 1]} : vector<32x256xf32> to vector<32x128xf32>
    %42 = arith.mulf %40, %41 : vector<32x128xf32>
    %43 = arith.addf %37, %42 : vector<32x128xf32>
    %44 = vector.extract_strided_slice %43 {offsets = [0, 0], sizes = [32, 32], strides = [1, 1]} : vector<32x128xf32> to vector<32x32xf32>
    %45 = vector.extract_strided_slice %43 {offsets = [0, 32], sizes = [32, 32], strides = [1, 1]} : vector<32x128xf32> to vector<32x32xf32>
    %46 = arith.addf %44, %45 : vector<32x32xf32>
    %47 = vector.extract_strided_slice %43 {offsets = [0, 64], sizes = [32, 32], strides = [1, 1]} : vector<32x128xf32> to vector<32x32xf32>
    %48 = arith.addf %46, %47 : vector<32x32xf32>
    %49 = vector.extract_strided_slice %43 {offsets = [0, 96], sizes = [32, 32], strides = [1, 1]} : vector<32x128xf32> to vector<32x32xf32>
    %50 = arith.addf %48, %49 : vector<32x32xf32>
    %51 = arith.negf %50 : vector<32x32xf32>
    %52 = math.exp %51 : vector<32x32xf32>
    %cst_22 = arith.constant 1.000000e+00 : f32
    %53 = vector.broadcast %cst_22 : f32 to vector<32x32xf32>
    %54 = arith.addf %53, %52 : vector<32x32xf32>
    %55 = arith.divf %53, %54 : vector<32x32xf32>
    %c0_23 = arith.constant 0 : index
    %c0_24 = arith.constant 0 : index
    %56 = vector.load %arg6[%c0_23, %c0_24] : memref<128x256xbf16, #tpu.memory_space<vmem>>, vector<128x128xbf16>
    %57 = arith.extf %56 : vector<128x128xbf16> to vector<128x128xf32>
    %cst_25 = arith.constant dense<0.000000e+00> : vector<32x128xf32>
    %58 = tpu.matmul %32, %57, %cst_25 {dimension_numbers = #tpu.dot_dimension_numbers<[1], [0], [0], [1], [0, 0, 1, 1], [], []>} : vector<32x128xf32>, vector<128x128xf32>, vector<32x128xf32> -> vector<32x128xf32>
    %59 = vector.extract_strided_slice %3 {offsets = [0, 0], sizes = [32, 128], strides = [1, 1]} : vector<32x256xf32> to vector<32x128xf32>
    %60 = arith.mulf %58, %59 : vector<32x128xf32>
    %c0_26 = arith.constant 0 : index
    %c128_27 = arith.constant 128 : index
    %61 = vector.load %arg6[%c0_26, %c128_27] : memref<128x256xbf16, #tpu.memory_space<vmem>>, vector<128x128xbf16>
    %62 = arith.extf %61 : vector<128x128xbf16> to vector<128x128xf32>
    %cst_28 = arith.constant dense<0.000000e+00> : vector<32x128xf32>
    %63 = tpu.matmul %32, %62, %cst_28 {dimension_numbers = #tpu.dot_dimension_numbers<[1], [0], [0], [1], [0, 0, 1, 1], [], []>} : vector<32x128xf32>, vector<128x128xf32>, vector<32x128xf32> -> vector<32x128xf32>
    %64 = vector.extract_strided_slice %3 {offsets = [0, 128], sizes = [32, 128], strides = [1, 1]} : vector<32x256xf32> to vector<32x128xf32>
    %65 = arith.mulf %63, %64 : vector<32x128xf32>
    %66 = arith.addf %60, %65 : vector<32x128xf32>
    %67 = vector.extract_strided_slice %66 {offsets = [0, 0], sizes = [32, 32], strides = [1, 1]} : vector<32x128xf32> to vector<32x32xf32>
    %68 = vector.extract_strided_slice %66 {offsets = [0, 32], sizes = [32, 32], strides = [1, 1]} : vector<32x128xf32> to vector<32x32xf32>
    %69 = arith.addf %67, %68 : vector<32x32xf32>
    %70 = vector.extract_strided_slice %66 {offsets = [0, 64], sizes = [32, 32], strides = [1, 1]} : vector<32x128xf32> to vector<32x32xf32>
    %71 = arith.addf %69, %70 : vector<32x32xf32>
    %72 = vector.extract_strided_slice %66 {offsets = [0, 96], sizes = [32, 32], strides = [1, 1]} : vector<32x128xf32> to vector<32x32xf32>
    %73 = arith.addf %71, %72 : vector<32x32xf32>
    %74 = arith.negf %73 : vector<32x32xf32>
    %75 = math.exp %74 : vector<32x32xf32>
    %cst_29 = arith.constant 1.000000e+00 : f32
    %76 = vector.broadcast %cst_29 : f32 to vector<32x32xf32>
    %77 = arith.addf %76, %75 : vector<32x32xf32>
    %78 = arith.divf %76, %77 : vector<32x32xf32>
    %79 = arith.mulf %55, %1 : vector<32x32xf32>
    %80 = tpu.concatenate %0, %79 in 1 : vector<32x4xf32>, vector<32x32xf32> -> vector<32x36xf32>
    %cst_30 = arith.constant dense<0.000000e+00> : vector<32x36xf32>
    %81 = tpu.matmul %20, %80, %cst_30 {dimension_numbers = #tpu.dot_dimension_numbers<[1], [0], [0], [1], [0, 0, 1, 1], [], []>} : vector<32x32xf32>, vector<32x36xf32>, vector<32x36xf32> -> vector<32x36xf32>
    %cst_31 = arith.constant dense<0.000000e+00> : vector<32x36xf32>
    %82 = tpu.matmul %20, %81, %cst_31 {dimension_numbers = #tpu.dot_dimension_numbers<[1], [0], [0], [1], [0, 0, 1, 1], [], []>} : vector<32x32xf32>, vector<32x36xf32>, vector<32x36xf32> -> vector<32x36xf32>
    %cst_32 = arith.constant 2.000000e+00 : f32
    %83 = vector.broadcast %cst_32 : f32 to vector<32x36xf32>
    %84 = arith.mulf %83, %82 : vector<32x36xf32>
    %85 = arith.subf %84, %80 : vector<32x36xf32>
    %86 = tpu.concatenate %80, %81, %85, %25 in 1 : vector<32x36xf32>, vector<32x36xf32>, vector<32x36xf32>, vector<32x20xf32> -> vector<32x128xf32>
    %c0_33 = arith.constant 0 : index
    %c0_34 = arith.constant 0 : index
    %87 = vector.load %arg7[%c0_33, %c0_34] : memref<128x256xbf16, #tpu.memory_space<vmem>>, vector<128x128xbf16>
    %88 = arith.extf %87 : vector<128x128xbf16> to vector<128x128xf32>
    %cst_35 = arith.constant dense<0.000000e+00> : vector<32x128xf32>
    %89 = tpu.matmul %86, %88, %cst_35 {dimension_numbers = #tpu.dot_dimension_numbers<[1], [0], [0], [1], [0, 0, 1, 1], [], []>} : vector<32x128xf32>, vector<128x128xf32>, vector<32x128xf32> -> vector<32x128xf32>
    %90 = vector.extract_strided_slice %3 {offsets = [0, 0], sizes = [32, 128], strides = [1, 1]} : vector<32x256xf32> to vector<32x128xf32>
    %91 = arith.mulf %89, %90 : vector<32x128xf32>
    %c0_36 = arith.constant 0 : index
    %c128_37 = arith.constant 128 : index
    %92 = vector.load %arg7[%c0_36, %c128_37] : memref<128x256xbf16, #tpu.memory_space<vmem>>, vector<128x128xbf16>
    %93 = arith.extf %92 : vector<128x128xbf16> to vector<128x128xf32>
    %cst_38 = arith.constant dense<0.000000e+00> : vector<32x128xf32>
    %94 = tpu.matmul %86, %93, %cst_38 {dimension_numbers = #tpu.dot_dimension_numbers<[1], [0], [0], [1], [0, 0, 1, 1], [], []>} : vector<32x128xf32>, vector<128x128xf32>, vector<32x128xf32> -> vector<32x128xf32>
    %95 = vector.extract_strided_slice %3 {offsets = [0, 128], sizes = [32, 128], strides = [1, 1]} : vector<32x256xf32> to vector<32x128xf32>
    %96 = arith.mulf %94, %95 : vector<32x128xf32>
    %97 = arith.addf %91, %96 : vector<32x128xf32>
    %98 = vector.extract_strided_slice %97 {offsets = [0, 0], sizes = [32, 32], strides = [1, 1]} : vector<32x128xf32> to vector<32x32xf32>
    %99 = vector.extract_strided_slice %97 {offsets = [0, 32], sizes = [32, 32], strides = [1, 1]} : vector<32x128xf32> to vector<32x32xf32>
    %100 = arith.addf %98, %99 : vector<32x32xf32>
    %101 = vector.extract_strided_slice %97 {offsets = [0, 64], sizes = [32, 32], strides = [1, 1]} : vector<32x128xf32> to vector<32x32xf32>
    %102 = arith.addf %100, %101 : vector<32x32xf32>
    %103 = vector.extract_strided_slice %97 {offsets = [0, 96], sizes = [32, 32], strides = [1, 1]} : vector<32x128xf32> to vector<32x32xf32>
    %104 = arith.addf %102, %103 : vector<32x32xf32>
    %105 = math.tanh %104 : vector<32x32xf32>
    %106 = arith.mulf %78, %1 : vector<32x32xf32>
    %cst_39 = arith.constant 1.000000e+00 : f32
    %107 = vector.broadcast %cst_39 : f32 to vector<32x32xf32>
    %108 = arith.subf %107, %78 : vector<32x32xf32>
    %109 = arith.mulf %108, %105 : vector<32x32xf32>
    %110 = arith.addf %106, %109 : vector<32x32xf32>
    %c0_i32_40 = arith.constant 0 : i32
    %111 = arith.sitofp %c0_i32_40 : i32 to f32
    %112 = vector.broadcast %111 : f32 to vector<32x96xf32>
    %113 = tpu.concatenate %110, %112 in 1 : vector<32x32xf32>, vector<32x96xf32> -> vector<32x128xf32>
    %c0_41 = arith.constant 0 : index
    %c0_42 = arith.constant 0 : index
    %114 = vector.load %arg8[%c0_41, %c0_42] : memref<32x128xf32, #tpu.memory_space<vmem>>, vector<32x128xf32>
    tpu.vector_store %arg8[%c0_41, %c0_42], %113 {strides = array<i32>} : memref<32x128xf32, #tpu.memory_space<vmem>>, vector<32x128xf32>,
    return
  }
}

</mosaic_0001>

<llo_original>
// kernel: tpu_custom_call.1
$region0: #{tpu_custom_call.1}
  #allocation0 [shape = 'u32[]', space=smem, size = 0x4, offset = 0x4, fixed_abs, tag = 'smem constant byte address 0x4 - core index']
  #allocation1 [shape = 'u32[144,128]{1,0:T(1,128)}', space=vmem, size = 0x12000, scoped, tag = 'internal scratch']
  %s0 = inlined_call_operand.vmem [shape: f32[32,4], index: 0, kind: input, shape index: {}]
  %s1 = inlined_call_operand.hbm [shape: f32[32,32], index: 1, kind: input, shape index: {}]
  %s2 = inlined_call_operand.vmem [shape: f32[32,8], index: 2, kind: input, shape index: {}]
  %s3 = inlined_call_operand.vmem [shape: f32[32,256], index: 3, kind: input, shape index: {}]
  %s4 = inlined_call_operand.hbm [shape: f32[32,32], index: 4, kind: input, shape index: {}]
  %s5 = inlined_call_operand.hbm [shape: bf16[128,256], index: 5, kind: input, shape index: {}]
  %s6 = inlined_call_operand.hbm [shape: bf16[128,256], index: 6, kind: input, shape index: {}]
  %s7 = inlined_call_operand.hbm [shape: bf16[128,256], index: 7, kind: input, shape index: {}]
  %s8 = inlined_call_operand.hbm [shape: f32[32,128], index: 8, kind: output, shape index: {}]
  %s9 = sld [smem:[#allocation0]]
  $region62: #{tpu_custom_call.1} parent=0
    _
  %s11 = ssub.s32 1, %s9
  %s12 = scalar_select 0, %s11, %s9
  $region1: #{tpu_custom_call.1} parent=0
    #allocation2 [shape = 'u8[16384]{0}', space=vmem, size = 0x4000, scoped, tag = 'input window, operand 1, single buffered']
    #allocation3 [shape = 's32[1]{0}', space=sflag, size = 0x4, scoped, tag = 'scoped memory for tpu_custom_call.1']
    #allocation4 [shape = 's32[1]{0}', space=sflag, size = 0x4, scoped, tag = 'scoped memory for tpu_custom_call.1']
    #allocation5 [shape = 'u8[16384]{0}', space=vmem, size = 0x4000, scoped, tag = 'input window, operand 4, single buffered']
    #allocation6 [shape = 's32[1]{0}', space=sflag, size = 0x4, scoped, tag = 'scoped memory for tpu_custom_call.1']
    #allocation7 [shape = 'u8[65536]{0}', space=vmem, size = 0x10000, scoped, tag = 'input window, operand 5, single buffered']
    #allocation8 [shape = 'u8[65536]{0}', space=vmem, size = 0x10000, scoped, tag = 'input window, operand 6, single buffered']
    #allocation9 [shape = 's32[1]{0}', space=sflag, size = 0x4, scoped, tag = 'scoped memory for tpu_custom_call.1']
    #allocation10 [shape = 'u8[65536]{0}', space=vmem, size = 0x10000, scoped, tag = 'input window, operand 7, single buffered']
    #allocation11 [shape = 'u8[16384]{0}', space=vmem, size = 0x4000, scoped, tag = 'output window, operand 0, single buffered']
    %13 = vsyncpa [#allocation3], 0
    %14 = vsyncpa [#allocation6], 0
    %15 = vsyncpa [#allocation9], 0
    %16 = vsyncpa [#allocation4], 0
    // Predicated region
    $region2: #{tpu_custom_call.1} parent=1 // pred_check
      _
    $region3: #{tpu_custom_call.1} parent=1 // pred_check_branch
      %18 = sbr.rel (0) target = $region5
    $region4: #{tpu_custom_call.1} parent=1 // pred_region
      _
    $region5: #{tpu_custom_call.1} parent=1 // pred_fallthru
      _
    // Predicated region
    $region6: #{tpu_custom_call.1} parent=1 // pred_check
      _
    $region7: #{tpu_custom_call.1} parent=1 // pred_check_branch
      %20 = sbr.rel (0) target = $region9
    $region8: #{tpu_custom_call.1} parent=1 // pred_region
      %s22 = ssub.s32 512, 512
      %23 = vsyncadd [#allocation3], %s22
      %s24 = sshll.u32 [#allocation2], 4
      %s25 = int_to_ptr.vmem [resolvable:$true] %s24
      %30 = dma.hbm_to_vmem [thread:$0]  %s1, 512, %s25, [#allocation3], 128, 128, 8
    $region9: #{tpu_custom_call.1} parent=1 // pred_fallthru
      _
    // Predicated region
    $region10: #{tpu_custom_call.1} parent=1 // pred_check
      _
    $region11: #{tpu_custom_call.1} parent=1 // pred_check_branch
      %32 = sbr.rel (0) target = $region13
    $region12: #{tpu_custom_call.1} parent=1 // pred_region
      _
    $region13: #{tpu_custom_call.1} parent=1 // pred_fallthru
      _
    // Predicated region
    $region14: #{tpu_custom_call.1} parent=1 // pred_check
      _
    $region15: #{tpu_custom_call.1} parent=1 // pred_check_branch
      %34 = sbr.rel (0) target = $region17
    $region16: #{tpu_custom_call.1} parent=1 // pred_region
      _
    $region17: #{tpu_custom_call.1} parent=1 // pred_fallthru
      _
    // Predicated region
    $region18: #{tpu_custom_call.1} parent=1 // pred_check
      _
    $region19: #{tpu_custom_call.1} parent=1 // pred_check_branch
      %36 = sbr.rel (0) target = $region21
    $region20: #{tpu_custom_call.1} parent=1 // pred_region
      %s38 = ssub.s32 512, 512
      %39 = vsyncadd [#allocation6], %s38
      %s40 = sshll.u32 [#allocation5], 4
      %s41 = int_to_ptr.vmem [resolvable:$true] %s40
      %46 = dma.hbm_to_vmem [thread:$0]  %s4, 512, %s41, [#allocation6], 128, 128, 8
    $region21: #{tpu_custom_call.1} parent=1 // pred_fallthru
      _
    // Predicated region
    $region22: #{tpu_custom_call.1} parent=1 // pred_check
      _
    $region23: #{tpu_custom_call.1} parent=1 // pred_check_branch
      %48 = sbr.rel (0) target = $region25
    $region24: #{tpu_custom_call.1} parent=1 // pred_region
      %s50 = ssub.s32 2048, 2048
      %51 = vsyncadd [#allocation6], %s50
      %s52 = sshll.u32 [#allocation7], 4
      %s53 = int_to_ptr.vmem [resolvable:$true] %s52
      %58 = dma.hbm_to_vmem [thread:$0]  %s5, 2048, %s53, [#allocation6], 128, 128, 8
    $region25: #{tpu_custom_call.1} parent=1 // pred_fallthru
      _
    // Predicated region
    $region26: #{tpu_custom_call.1} parent=1 // pred_check
      _
    $region27: #{tpu_custom_call.1} parent=1 // pred_check_branch
      %60 = sbr.rel (0) target = $region29
    $region28: #{tpu_custom_call.1} parent=1 // pred_region
      %s62 = ssub.s32 2048, 2048
      %63 = vsyncadd [#allocation9], %s62
      %s64 = sshll.u32 [#allocation8], 4
      %s65 = int_to_ptr.vmem [resolvable:$true] %s64
      %70 = dma.hbm_to_vmem [thread:$0]  %s6, 2048, %s65, [#allocation9], 128, 128, 8
    $region29: #{tpu_custom_call.1} parent=1 // pred_fallthru
      _
    // Predicated region
    $region30: #{tpu_custom_call.1} parent=1 // pred_check
      _
    $region31: #{tpu_custom_call.1} parent=1 // pred_check_branch
      %72 = sbr.rel (0) target = $region33
    $region32: #{tpu_custom_call.1} parent=1 // pred_region
      %s74 = ssub.s32 2048, 2048
      %75 = vsyncadd [#allocation9], %s74
      %s76 = sshll.u32 [#allocation10], 4
      %s77 = int_to_ptr.vmem [resolvable:$true] %s76
      %82 = dma.hbm_to_vmem [thread:$0]  %s7, 2048, %s77, [#allocation9], 128, 128, 8
    $region33: #{tpu_custom_call.1} parent=1 // pred_fallthru
      _
    // Predicated region
    $region34: #{tpu_custom_call.1} parent=1 // pred_check
      _
    $region35: #{tpu_custom_call.1} parent=1 // pred_check_branch
      %84 = sbr.rel (0) target = $region37
    $region36: #{tpu_custom_call.1} parent=1 // pred_region
      %85 = dma.done [#allocation3], 512
    $region37: #{tpu_custom_call.1} parent=1 // pred_fallthru
      _
    // Predicated region
    $region38: #{tpu_custom_call.1} parent=1 // pred_check
      _
    $region39: #{tpu_custom_call.1} parent=1 // pred_check_branch
      %87 = sbr.rel (0) target = $region41
    $region40: #{tpu_custom_call.1} parent=1 // pred_region
      %88 = dma.done [#allocation6], 512
    $region41: #{tpu_custom_call.1} parent=1 // pred_fallthru
      _
    // Predicated region
    $region42: #{tpu_custom_call.1} parent=1 // pred_check
      _
    $region43: #{tpu_custom_call.1} parent=1 // pred_check_branch
      %90 = sbr.rel (0) target = $region45
    $region44: #{tpu_custom_call.1} parent=1 // pred_region
      %91 = dma.done [#allocation6], 2048
    $region45: #{tpu_custom_call.1} parent=1 // pred_fallthru
      _
    // Predicated region
    $region46: #{tpu_custom_call.1} parent=1 // pred_check
      _
    $region47: #{tpu_custom_call.1} parent=1 // pred_check_branch
      %93 = sbr.rel (0) target = $region49
    $region48: #{tpu_custom_call.1} parent=1 // pred_region
      %94 = dma.done [#allocation9], 2048
    $region49: #{tpu_custom_call.1} parent=1 // pred_fallthru
      _
    // Predicated region
    $region50: #{tpu_custom_call.1} parent=1 // pred_check
      _
    $region51: #{tpu_custom_call.1} parent=1 // pred_check_branch
      %96 = sbr.rel (0) target = $region53
    $region52: #{tpu_custom_call.1} parent=1 // pred_region
      %97 = dma.done [#allocation9], 2048
    $region53: #{tpu_custom_call.1} parent=1 // pred_fallthru
      _
    %v98 = vld [vmem:[%s0] sm:$0xff]
    %v99 = vld [vmem:[%s0 + $0x8] sm:$0xff]
    %v100 = vld [vmem:[%s0 + $0x10] sm:$0xff]
    %v101 = vld [vmem:[%s0 + $0x18] sm:$0xff]
    %v102 = vld [vmem:[#allocation2] sm:$0xff]
    %v103 = vld [vmem:[#allocation2 + $0x8] sm:$0xff]
    %v104 = vld [vmem:[#allocation2 + $0x10] sm:$0xff]
    %v105 = vld [vmem:[#allocation2 + $0x18] sm:$0xff]
    %v106 = vld [vmem:[%s2] sm:$0xff]
    %v107 = vld [vmem:[%s2 + $0x8] sm:$0xff]
    %v108 = vld [vmem:[%s2 + $0x10] sm:$0xff]
    %v109 = vld [vmem:[%s2 + $0x18] sm:$0xff]
    %v110 = vld [vmem:[%s3] sm:$0xff]
    %v111 = vld [vmem:[%s3 + $0x8] sm:$0xff]
    %v112 = vld [vmem:[%s3 + $0x10] sm:$0xff]
    %v113 = vld [vmem:[%s3 + $0x18] sm:$0xff]
    %v114 = vld [vmem:[%s3 + $0x20] sm:$0xff]
    %v115 = vld [vmem:[%s3 + $0x28] sm:$0xff]
    %v116 = vld [vmem:[%s3 + $0x30] sm:$0xff]
    %v117 = vld [vmem:[%s3 + $0x38] sm:$0xff]
    %vm118 = vcmask 64512
    %v120 = vsel %vm118, %v106, 0
    %v123 = vsel %vm118, %v107, 0
    %v126 = vsel %vm118, %v108, 0
    %v129 = vsel %vm118, %v109, 0
    %131 = vmatprep.subr.mxu0 0.0
    %132 = vmatpush1.xpose.msra.mxu0 %v120
    %133 = vmatprep.subr.mxu0 0.0
    %134 = vmatpush1.xpose.msra.mxu0 %v123
    %135 = vmatprep.subr.mxu0 0.0
    %136 = vmatpush1.xpose.msra.mxu0 %v126
    %137 = vmatprep.subr.mxu0 0.0
    %138 = vmatpush1.xpose.msra.mxu0 %v129
    %139 = vmatprep.subr.mxu0 0.0
    %140 = vmatpush1.xpose.msra.mxu0 0.0
    %141 = vmatprep.subr.mxu0 0.0
    %142 = vmatpush1.xpose.msra.mxu0 0.0
    %143 = vmatprep.subr.mxu0 0.0
    %144 = vmatpush1.xpose.msra.mxu0 0.0
    %145 = vmatprep.subr.mxu0 0.0
    %146 = vmatpush1.xpose.msra.mxu0 0.0
    %147 = vmatprep.subr.mxu0 0.0
    %148 = vmatpush1.xpose.msra.mxu0 0.0
    %149 = vmatprep.subr.mxu0 0.0
    %150 = vmatpush1.xpose.msra.mxu0 0.0
    %151 = vmatprep.subr.mxu0 0.0
    %152 = vmatpush1.xpose.msra.mxu0 0.0
    %153 = vmatprep.subr.mxu0 0.0
    %154 = vmatpush1.xpose.msra.mxu0 0.0
    %155 = vmatprep.subr.mxu0 0.0
    %156 = vmatpush1.xpose.msra.mxu0 0.0
    %157 = vmatprep.subr.mxu0 0.0
    %158 = vmatpush1.xpose.msra.mxu0 0.0
    %159 = vmatprep.subr.mxu0 0.0
    %160 = vmatpush1.xpose.msra.mxu0 0.0
    %161 = vmatprep.subr.mxu0 0.0
    %162 = vmatpush1.xpose.msra.mxu0 0.0
    %163 = vmatprep.subr.mxu0 0.0
    %164 = vmatpush1.xpose.msra.mxu0 0.0
    %165 = vmatprep.subr.mxu0 0.0
    %166 = vmatpush1.xpose.msra.mxu0 0.0
    %167 = vmatprep.subr.mxu0 0.0
    %168 = vmatpush1.xpose.msra.mxu0 0.0
    %169 = vmatprep.subr.mxu0 0.0
    %170 = vmatpush1.xpose.msra.mxu0 0.0
    %171 = vmatprep.subr.mxu0 0.0
    %172 = vmatpush1.xpose.msra.mxu0 0.0
    %173 = vmatprep.subr.mxu0 0.0
    %174 = vmatpush1.xpose.msra.mxu0 0.0
    %175 = vmatprep.subr.mxu0 0.0
    %176 = vmatpush1.xpose.msra.mxu0 0.0
    %177 = vmatprep.subr.mxu0 0.0
    %178 = vmatpush1.xpose.msra.mxu0 0.0
    %179 = vmatprep.subr.mxu0 0.0
    %180 = vmatpush1.xpose.msra.mxu0 0.0
    %181 = vmatprep.subr.mxu0 0.0
    %182 = vmatpush1.xpose.msra.mxu0 0.0
    %183 = vmatprep.subr.mxu0 0.0
    %184 = vmatpush1.xpose.msra.mxu0 0.0
    %185 = vmatprep.subr.mxu0 0.0
    %186 = vmatpush1.xpose.msra.mxu0 0.0
    %187 = vmatprep.subr.mxu0 0.0
    %188 = vmatpush1.xpose.msra.mxu0 0.0
    %189 = vmatprep.subr.mxu0 0.0
    %190 = vmatpush1.xpose.msra.mxu0 0.0
    %191 = vmatprep.subr.mxu0 0.0
    %192 = vmatpush1.xpose.msra.mxu0 0.0
    %193 = vmatprep.subr.mxu0 0.0
    %194 = vmatpush1.xpose.msra.mxu0 0.0
    %195 = vmatprep.mubr.f32.mxu0 0.0
    %196 = vmatmul.mubr.f32.gmra.mrb[0].mxu0 %v120
    %v197 = vpop.f32.mrb[0].mxu0
    %v198 = vadd.f32 0.0, %v197
    %v199 = vpop.f32.mrb[0].mxu0
    %200 = vmatprep.mubr.f32.mxu0 0.0
    %201 = vmatmul.mubr.f32.gmra.mrb[0].mxu0 %v123
    %v202 = vpop.f32.mrb[0].mxu0
    %v203 = vadd.f32 0.0, %v202
    %v204 = vpop.f32.mrb[0].mxu0
    %205 = vmatprep.mubr.f32.mxu0 0.0
    %206 = vmatmul.mubr.f32.gmra.mrb[0].mxu0 %v126
    %v207 = vpop.f32.mrb[0].mxu0
    %v208 = vadd.f32 0.0, %v207
    %v209 = vpop.f32.mrb[0].mxu0
    %210 = vmatprep.mubr.f32.mxu0 0.0
    %211 = vmatmul.mubr.f32.gmra.mrb[0].mxu0 %v129
    %v212 = vpop.f32.mrb[0].mxu0
    %v213 = vadd.f32 0.0, %v212
    %v214 = vpop.f32.mrb[0].mxu0
    %215 = vdwg.mxu0
    %v216 = vmax.f32 %v198, 0.0
    %v217 = vmax.f32 %v203, 0.0
    %v218 = vmax.f32 %v208, 0.0
    %v219 = vmax.f32 %v213, 0.0
    %v220 = vld [vmem:[#allocation5] sm:$0xff]
    %v221 = vld [vmem:[#allocation5 + $0x8] sm:$0xff]
    %v222 = vld [vmem:[#allocation5 + $0x10] sm:$0xff]
    %v223 = vld [vmem:[#allocation5 + $0x18] sm:$0xff]
    %vm224 = vcmp.gt.f32.partialorder %v220, 0.5
    %vm225 = vcmp.gt.f32.partialorder %v221, 0.5
    %vm226 = vcmp.gt.f32.partialorder %v222, 0.5
    %vm227 = vcmp.gt.f32.partialorder %v223, 0.5
    %v228 = vsel %vm224, %v216, -1e+30
    %v229 = vsel %vm225, %v217, -1e+30
    %v230 = vsel %vm226, %v218, -1e+30
    %v231 = vsel %vm227, %v219, -1e+30
    %vm232 = vcmask 261120
    %v233 = vsel %vm232, %v228, -inf
    %234 = vmax.xlane.f32.xlu0 %v233
    %v235 = vpop.xlane.xlu0 %234
    %v236 = vsel %vm232, %v229, -inf
    %237 = vmax.xlane.f32.xlu0 %v236
    %v238 = vpop.xlane.xlu0 %237
    %v239 = vsel %vm232, %v230, -inf
    %240 = vmax.xlane.f32.xlu0 %v239
    %v241 = vpop.xlane.xlu0 %240
    %v242 = vsel %vm232, %v231, -inf
    %243 = vmax.xlane.f32.xlu0 %v242
    %v244 = vpop.xlane.xlu0 %243
    %v245 = vsub.f32 %v228, %v235
    %v246 = vsub.f32 %v229, %v238
    %v247 = vsub.f32 %v230, %v241
    %v248 = vsub.f32 %v231, %v244
    %v249 = vmul.f32 %v245, 1.442695
    %v250 = vpow.pop %v249
    %v251 = vmul.f32 %v246, 1.442695
    %v252 = vpow.pop %v251
    %v253 = vmul.f32 %v247, 1.442695
    %v254 = vpow.pop %v253
    %v255 = vmul.f32 %v248, 1.442695
    %v256 = vpow.pop %v255
    %v257 = vsel %vm232, %v250, 0.0
    %258 = vadd.xlane.f32.xlu0 %v257
    %v259 = vpop.xlane.xlu0 %258
    %v260 = vsel %vm232, %v252, 0.0
    %261 = vadd.xlane.f32.xlu0 %v260
    %v262 = vpop.xlane.xlu0 %261
    %v263 = vsel %vm232, %v254, 0.0
    %264 = vadd.xlane.f32.xlu0 %v263
    %v265 = vpop.xlane.xlu0 %264
    %v266 = vsel %vm232, %v256, 0.0
    %267 = vadd.xlane.f32.xlu0 %v266
    %v268 = vpop.xlane.xlu0 %267
    %v269 = vrcp.pop %v259
    %v270 = vmul.f32 %v250, %v269
    %v271 = vrcp.pop %v262
    %v272 = vmul.f32 %v252, %v271
    %v273 = vrcp.pop %v265
    %v274 = vmul.f32 %v254, %v273
    %v275 = vrcp.pop %v268
    %v276 = vmul.f32 %v256, %v275
    %v277 = vlaneseq
    %v278 = vand.u32 %v277, 127
    %vm279 = vcmp.eq.s32.totalorder %v278, 0
    %v280 = vsel %vm279, 1, 0
    %v281 = vcvt.s32.f32 %v280
    %286 = vrot.lane.b32.xlu0 %v102, 4
    %v287 = vpop.permute.xlu0 %286
    %288 = vrot.lane.b32.xlu0 %v103, 4
    %v289 = vpop.permute.xlu0 %288
    %290 = vrot.lane.b32.xlu0 %v104, 4
    %v291 = vpop.permute.xlu0 %290
    %292 = vrot.lane.b32.xlu0 %v105, 4
    %v293 = vpop.permute.xlu0 %292
    %vm298 = vcmask 31744
    %v299 = vsel %vm298, %v98, %v287
    %v300 = vsel %vm298, %v99, %v289
    %v301 = vsel %vm298, %v100, %v291
    %v302 = vsel %vm298, %v101, %v293
    %v304 = vsel %vm232, %v270, 0
    %v307 = vsel %vm232, %v272, 0
    %v310 = vsel %vm232, %v274, 0
    %v313 = vsel %vm232, %v276, 0
    %315 = vmatprep.subr.mxu0 0.0
    %316 = vmatpush1.msra.mxu0 %v299
    %317 = vmatprep.subr.mxu0 0.0
    %318 = vmatpush1.msra.mxu0 %v300
    %319 = vmatprep.subr.mxu0 0.0
    %320 = vmatpush1.msra.mxu0 %v301
    %321 = vmatprep.subr.mxu0 0.0
    %322 = vmatpush1.msra.mxu0 %v302
    %323 = vmatprep.subr.mxu0 0.0
    %324 = vmatpush1.msra.mxu0 0.0
    %325 = vmatprep.subr.mxu0 0.0
    %326 = vmatpush1.msra.mxu0 0.0
    %327 = vmatprep.subr.mxu0 0.0
    %328 = vmatpush1.msra.mxu0 0.0
    %329 = vmatprep.subr.mxu0 0.0
    %330 = vmatpush1.msra.mxu0 0.0
    %331 = vmatprep.subr.mxu0 0.0
    %332 = vmatpush1.msra.mxu0 0.0
    %333 = vmatprep.subr.mxu0 0.0
    %334 = vmatpush1.msra.mxu0 0.0
    %335 = vmatprep.subr.mxu0 0.0
    %336 = vmatpush1.msra.mxu0 0.0
    %337 = vmatprep.subr.mxu0 0.0
    %338 = vmatpush1.msra.mxu0 0.0
    %339 = vmatprep.subr.mxu0 0.0
    %340 = vmatpush1.msra.mxu0 0.0
    %341 = vmatprep.subr.mxu0 0.0
    %342 = vmatpush1.msra.mxu0 0.0
    %343 = vmatprep.subr.mxu0 0.0
    %344 = vmatpush1.msra.mxu0 0.0
    %345 = vmatprep.subr.mxu0 0.0
    %346 = vmatpush1.msra.mxu0 0.0
    %347 = vmatprep.subr.mxu0 0.0
    %348 = vmatpush1.msra.mxu0 0.0
    %349 = vmatprep.subr.mxu0 0.0
    %350 = vmatpush1.msra.mxu0 0.0
    %351 = vmatprep.subr.mxu0 0.0
    %352 = vmatpush1.msra.mxu0 0.0
    %353 = vmatprep.subr.mxu0 0.0
    %354 = vmatpush1.msra.mxu0 0.0
    %355 = vmatprep.subr.mxu0 0.0
    %356 = vmatpush1.msra.mxu0 0.0
    %357 = vmatprep.subr.mxu0 0.0
    %358 = vmatpush1.msra.mxu0 0.0
    %359 = vmatprep.subr.mxu0 0.0
    %360 = vmatpush1.msra.mxu0 0.0
    %361 = vmatprep.subr.mxu0 0.0
    %362 = vmatpush1.msra.mxu0 0.0
    %363 = vmatprep.subr.mxu0 0.0
    %364 = vmatpush1.msra.mxu0 0.0
    %365 = vmatprep.subr.mxu0 0.0
    %366 = vmatpush1.msra.mxu0 0.0
    %367 = vmatprep.subr.mxu0 0.0
    %368 = vmatpush1.msra.mxu0 0.0
    %369 = vmatprep.subr.mxu0 0.0
    %370 = vmatpush1.msra.mxu0 0.0
    %371 = vmatprep.subr.mxu0 0.0
    %372 = vmatpush1.msra.mxu0 0.0
    %373 = vmatprep.subr.mxu0 0.0
    %374 = vmatpush1.msra.mxu0 0.0
    %375 = vmatprep.subr.mxu0 0.0
    %376 = vmatpush1.msra.mxu0 0.0
    %377 = vmatprep.subr.mxu0 0.0
    %378 = vmatpush1.msra.mxu0 0.0
    %379 = vmatprep.mubr.f32.mxu0 0.0
    %380 = vmatmul.mubr.f32.gmra.mrb[0].mxu0 %v304
    %v381 = vpop.f32.mrb[0].mxu0
    %v382 = vadd.f32 0.0, %v381
    %v383 = vpop.f32.mrb[0].mxu0
    %384 = vmatprep.mubr.f32.mxu0 0.0
    %385 = vmatmul.mubr.f32.gmra.mrb[0].mxu0 %v307
    %v386 = vpop.f32.mrb[0].mxu0
    %v387 = vadd.f32 0.0, %v386
    %v388 = vpop.f32.mrb[0].mxu0
    %389 = vmatprep.mubr.f32.mxu0 0.0
    %390 = vmatmul.mubr.f32.gmra.mrb[0].mxu0 %v310
    %v391 = vpop.f32.mrb[0].mxu0
    %v392 = vadd.f32 0.0, %v391
    %v393 = vpop.f32.mrb[0].mxu0
    %394 = vmatprep.mubr.f32.mxu0 0.0
    %395 = vmatmul.mubr.f32.gmra.mrb[0].mxu0 %v313
    %v396 = vpop.f32.mrb[0].mxu0
    %v397 = vadd.f32 0.0, %v396
    %v398 = vpop.f32.mrb[0].mxu0
    %399 = vdwg.mxu0
    %400 = vmatprep.subr.mxu0 0.0
    %401 = vmatpush1.msra.mxu0 %v382
    %402 = vmatprep.subr.mxu0 0.0
    %403 = vmatpush1.msra.mxu0 %v387
    %404 = vmatprep.subr.mxu0 0.0
    %405 = vmatpush1.msra.mxu0 %v392
    %406 = vmatprep.subr.mxu0 0.0
    %407 = vmatpush1.msra.mxu0 %v397
    %408 = vmatprep.subr.mxu0 0.0
    %409 = vmatpush1.msra.mxu0 0.0
    %410 = vmatprep.subr.mxu0 0.0
    %411 = vmatpush1.msra.mxu0 0.0
    %412 = vmatprep.subr.mxu0 0.0
    %413 = vmatpush1.msra.mxu0 0.0
    %414 = vmatprep.subr.mxu0 0.0
    %415 = vmatpush1.msra.mxu0 0.0
    %416 = vmatprep.subr.mxu0 0.0
    %417 = vmatpush1.msra.mxu0 0.0
    %418 = vmatprep.subr.mxu0 0.0
    %419 = vmatpush1.msra.mxu0 0.0
    %420 = vmatprep.subr.mxu0 0.0
    %421 = vmatpush1.msra.mxu0 0.0
    %422 = vmatprep.subr.mxu0 0.0
    %423 = vmatpush1.msra.mxu0 0.0
    %424 = vmatprep.subr.mxu0 0.0
    %425 = vmatpush1.msra.mxu0 0.0
    %426 = vmatprep.subr.mxu0 0.0
    %427 = vmatpush1.msra.mxu0 0.0
    %428 = vmatprep.subr.mxu0 0.0
    %429 = vmatpush1.msra.mxu0 0.0
    %430 = vmatprep.subr.mxu0 0.0
    %431 = vmatpush1.msra.mxu0 0.0
    %432 = vmatprep.subr.mxu0 0.0
    %433 = vmatpush1.msra.mxu0 0.0
    %434 = vmatprep.subr.mxu0 0.0
    %435 = vmatpush1.msra.mxu0 0.0
    %436 = vmatprep.subr.mxu0 0.0
    %437 = vmatpush1.msra.mxu0 0.0
    %438 = vmatprep.subr.mxu0 0.0
    %439 = vmatpush1.msra.mxu0 0.0
    %440 = vmatprep.subr.mxu0 0.0
    %441 = vmatpush1.msra.mxu0 0.0
    %442 = vmatprep.subr.mxu0 0.0
    %443 = vmatpush1.msra.mxu0 0.0
    %444 = vmatprep.subr.mxu0 0.0
    %445 = vmatpush1.msra.mxu0 0.0
    %446 = vmatprep.subr.mxu0 0.0
    %447 = vmatpush1.msra.mxu0 0.0
    %448 = vmatprep.subr.mxu0 0.0
    %449 = vmatpush1.msra.mxu0 0.0
    %450 = vmatprep.subr.mxu0 0.0
    %451 = vmatpush1.msra.mxu0 0.0
    %452 = vmatprep.subr.mxu0 0.0
    %453 = vmatpush1.msra.mxu0 0.0
    %454 = vmatprep.subr.mxu0 0.0
    %455 = vmatpush1.msra.mxu0 0.0
    %456 = vmatprep.subr.mxu0 0.0
    %457 = vmatpush1.msra.mxu0 0.0
    %458 = vmatprep.subr.mxu0 0.0
    %459 = vmatpush1.msra.mxu0 0.0
    %460 = vmatprep.subr.mxu0 0.0
    %461 = vmatpush1.msra.mxu0 0.0
    %462 = vmatprep.subr.mxu0 0.0
    %463 = vmatpush1.msra.mxu0 0.0
    %464 = vmatprep.mubr.f32.mxu0 0.0
    %465 = vmatmul.mubr.f32.gmra.mrb[0].mxu0 %v304
    %v466 = vpop.f32.mrb[0].mxu0
    %v467 = vadd.f32 0.0, %v466
    %v468 = vpop.f32.mrb[0].mxu0
    %469 = vmatprep.mubr.f32.mxu0 0.0
    %470 = vmatmul.mubr.f32.gmra.mrb[0].mxu0 %v307
    %v471 = vpop.f32.mrb[0].mxu0
    %v472 = vadd.f32 0.0, %v471
    %v473 = vpop.f32.mrb[0].mxu0
    %474 = vmatprep.mubr.f32.mxu0 0.0
    %475 = vmatmul.mubr.f32.gmra.mrb[0].mxu0 %v310
    %v476 = vpop.f32.mrb[0].mxu0
    %v477 = vadd.f32 0.0, %v476
    %v478 = vpop.f32.mrb[0].mxu0
    %479 = vmatprep.mubr.f32.mxu0 0.0
    %480 = vmatmul.mubr.f32.gmra.mrb[0].mxu0 %v313
    %v481 = vpop.f32.mrb[0].mxu0
    %v482 = vadd.f32 0.0, %v481
    %v483 = vpop.f32.mrb[0].mxu0
    %484 = vdwg.mxu0
    %v485 = vmul.f32 %v467, 2.0
    %v486 = vmul.f32 %v472, 2.0
    %v487 = vmul.f32 %v477, 2.0
    %v488 = vmul.f32 %v482, 2.0
    %v489 = vsub.f32 %v485, %v299
    %v490 = vsub.f32 %v486, %v300
    %v491 = vsub.f32 %v487, %v301
    %v492 = vsub.f32 %v488, %v302
    %497 = vrot.lane.b32.xlu0 %v382, 36
    %v498 = vpop.permute.xlu0 %497
    %499 = vrot.lane.b32.xlu0 %v387, 36
    %v500 = vpop.permute.xlu0 %499
    %501 = vrot.lane.b32.xlu0 %v392, 36
    %v502 = vpop.permute.xlu0 %501
    %503 = vrot.lane.b32.xlu0 %v397, 36
    %v504 = vpop.permute.xlu0 %503
    %513 = vrot.lane.b32.xlu0 %v489, 72
    %v514 = vpop.permute.xlu0 %513
    %515 = vrot.lane.b32.xlu0 %v490, 72
    %v516 = vpop.permute.xlu0 %515
    %517 = vrot.lane.b32.xlu0 %v491, 72
    %v518 = vpop.permute.xlu0 %517
    %519 = vrot.lane.b32.xlu0 %v492, 72
    %v520 = vpop.permute.xlu0 %519
    %526 = vrot.lane.b32.xlu0 %v281, 108
    %v527 = vpop.permute.xlu0 %526
    %vm529 = vcmask 293888
    %v530 = vsel %vm529, %v299, %v498
    %v531 = vsel %vm529, %v300, %v500
    %v532 = vsel %vm529, %v301, %v502
    %v533 = vsel %vm529, %v302, %v504
    %vm534 = vcmask 588800
    %v535 = vsel %vm534, %v530, %v514
    %v536 = vsel %vm534, %v531, %v516
    %v537 = vsel %vm534, %v532, %v518
    %v538 = vsel %vm534, %v533, %v520
    %vm539 = vcmask 883712
    %v540 = vsel %vm539, %v535, %v527
    %v541 = vsel %vm539, %v536, %v527
    %v542 = vsel %vm539, %v537, %v527
    %v543 = vsel %vm539, %v538, %v527
    %v544 = vld [vmem:[#allocation7] sm:$0xf]
    %v545 = vld [vmem:[#allocation7 + $0x8] sm:$0xf]
    %v546 = vld [vmem:[#allocation7 + $0x10] sm:$0xf]
    %v547 = vld [vmem:[#allocation7 + $0x18] sm:$0xf]
    %v548 = vld [vmem:[#allocation7 + $0x20] sm:$0xf]
    %v549 = vld [vmem:[#allocation7 + $0x28] sm:$0xf]
    %v550 = vld [vmem:[#allocation7 + $0x30] sm:$0xf]
    %v551 = vld [vmem:[#allocation7 + $0x38] sm:$0xf]
    %v552 = vld [vmem:[#allocation7 + $0x40] sm:$0xf]
    %v553 = vld [vmem:[#allocation7 + $0x48] sm:$0xf]
    %v554 = vld [vmem:[#allocation7 + $0x50] sm:$0xf]
    %v555 = vld [vmem:[#allocation7 + $0x58] sm:$0xf]
    %v556 = vld [vmem:[#allocation7 + $0x60] sm:$0xf]
    %v557 = vld [vmem:[#allocation7 + $0x68] sm:$0xf]
    %v558 = vld [vmem:[#allocation7 + $0x70] sm:$0xf]
    %v559 = vld [vmem:[#allocation7 + $0x78] sm:$0xf]
    %v560 = vunpack.c.l.bf16 %v544
    %v561 = vunpack.c.l.bf16 %v545
    %v562 = vunpack.c.l.bf16 %v546
    %v563 = vunpack.c.l.bf16 %v547
    %v564 = vunpack.c.l.bf16 %v548
    %v565 = vunpack.c.l.bf16 %v549
    %v566 = vunpack.c.l.bf16 %v550
    %v567 = vunpack.c.l.bf16 %v551
    %v568 = vunpack.c.l.bf16 %v552
    %v569 = vunpack.c.l.bf16 %v553
    %v570 = vunpack.c.l.bf16 %v554
    %v571 = vunpack.c.l.bf16 %v555
    %v572 = vunpack.c.l.bf16 %v556
    %v573 = vunpack.c.l.bf16 %v557
    %v574 = vunpack.c.l.bf16 %v558
    %v575 = vunpack.c.l.bf16 %v559
    %576 = vmatprep.subr.mxu0 0.0
    %577 = vmatpush1.msra.mxu0 %v560
    %578 = vmatprep.subr.mxu0 0.0
    %579 = vmatpush1.msra.mxu0 %v561
    %580 = vmatprep.subr.mxu0 0.0
    %581 = vmatpush1.msra.mxu0 %v562
    %582 = vmatprep.subr.mxu0 0.0
    %583 = vmatpush1.msra.mxu0 %v563
    %584 = vmatprep.subr.mxu0 0.0
    %585 = vmatpush1.msra.mxu0 %v564
    %586 = vmatprep.subr.mxu0 0.0
    %587 = vmatpush1.msra.mxu0 %v565
    %588 = vmatprep.subr.mxu0 0.0
    %589 = vmatpush1.msra.mxu0 %v566
    %590 = vmatprep.subr.mxu0 0.0
    %591 = vmatpush1.msra.mxu0 %v567
    %592 = vmatprep.subr.mxu0 0.0
    %593 = vmatpush1.msra.mxu0 %v568
    %594 = vmatprep.subr.mxu0 0.0
    %595 = vmatpush1.msra.mxu0 %v569
    %596 = vmatprep.subr.mxu0 0.0
    %597 = vmatpush1.msra.mxu0 %v570
    %598 = vmatprep.subr.mxu0 0.0
    %599 = vmatpush1.msra.mxu0 %v571
    %600 = vmatprep.subr.mxu0 0.0
    %601 = vmatpush1.msra.mxu0 %v572
    %602 = vmatprep.subr.mxu0 0.0
    %603 = vmatpush1.msra.mxu0 %v573
    %604 = vmatprep.subr.mxu0 0.0
    %605 = vmatpush1.msra.mxu0 %v574
    %606 = vmatprep.subr.mxu0 0.0
    %607 = vmatpush1.msra.mxu0 %v575
    %608 = vmatprep.subr.mxu0 0.0
    %609 = vmatpush1.msra.mxu0 0.0
    %610 = vmatprep.subr.mxu0 0.0
    %611 = vmatpush1.msra.mxu0 0.0
    %612 = vmatprep.subr.mxu0 0.0
    %613 = vmatpush1.msra.mxu0 0.0
    %614 = vmatprep.subr.mxu0 0.0
    %615 = vmatpush1.msra.mxu0 0.0
    %616 = vmatprep.subr.mxu0 0.0
    %617 = vmatpush1.msra.mxu0 0.0
    %618 = vmatprep.subr.mxu0 0.0
    %619 = vmatpush1.msra.mxu0 0.0
    %620 = vmatprep.subr.mxu0 0.0
    %621 = vmatpush1.msra.mxu0 0.0
    %622 = vmatprep.subr.mxu0 0.0
    %623 = vmatpush1.msra.mxu0 0.0
    %624 = vmatprep.subr.mxu0 0.0
    %625 = vmatpush1.msra.mxu0 0.0
    %626 = vmatprep.subr.mxu0 0.0
    %627 = vmatpush1.msra.mxu0 0.0
    %628 = vmatprep.subr.mxu0 0.0
    %629 = vmatpush1.msra.mxu0 0.0
    %630 = vmatprep.subr.mxu0 0.0
    %631 = vmatpush1.msra.mxu0 0.0
    %632 = vmatprep.subr.mxu0 0.0
    %633 = vmatpush1.msra.mxu0 0.0
    %634 = vmatprep.subr.mxu0 0.0
    %635 = vmatpush1.msra.mxu0 0.0
    %636 = vmatprep.subr.mxu0 0.0
    %637 = vmatpush1.msra.mxu0 0.0
    %638 = vmatprep.subr.mxu0 0.0
    %639 = vmatpush1.msra.mxu0 0.0
    %640 = vmatprep.mubr.f32.mxu0 0.0
    %641 = vmatmul.mubr.f32.gmra.mrb[0].mxu0 %v540
    %v642 = vpop.f32.mrb[0].mxu0
    %v643 = vadd.f32 0.0, %v642
    %v644 = vpop.f32.mrb[0].mxu0
    %645 = vmatprep.mubr.f32.mxu0 0.0
    %646 = vmatmul.mubr.f32.gmra.mrb[0].mxu0 %v541
    %v647 = vpop.f32.mrb[0].mxu0
    %v648 = vadd.f32 0.0, %v647
    %v649 = vpop.f32.mrb[0].mxu0
    %650 = vmatprep.mubr.f32.mxu0 0.0
    %651 = vmatmul.mubr.f32.gmra.mrb[0].mxu0 %v542
    %v652 = vpop.f32.mrb[0].mxu0
    %v653 = vadd.f32 0.0, %v652
    %v654 = vpop.f32.mrb[0].mxu0
    %655 = vmatprep.mubr.f32.mxu0 0.0
    %656 = vmatmul.mubr.f32.gmra.mrb[0].mxu0 %v543
    %v657 = vpop.f32.mrb[0].mxu0
    %v658 = vadd.f32 0.0, %v657
    %v659 = vpop.f32.mrb[0].mxu0
    %660 = vdwg.mxu0
    %v661 = vmul.f32 %v643, %v110
    %v662 = vmul.f32 %v648, %v112
    %v663 = vmul.f32 %v653, %v114
    %v664 = vmul.f32 %v658, %v116
    %v665 = vld [vmem:[#allocation7 + $0x4] sm:$0xf]
    %v666 = vld [vmem:[#allocation7 + $0xc] sm:$0xf]
    %v667 = vld [vmem:[#allocation7 + $0x14] sm:$0xf]
    %v668 = vld [vmem:[#allocation7 + $0x1c] sm:$0xf]
    %v669 = vld [vmem:[#allocation7 + $0x24] sm:$0xf]
    %v670 = vld [vmem:[#allocation7 + $0x2c] sm:$0xf]
    %v671 = vld [vmem:[#allocation7 + $0x34] sm:$0xf]
    %v672 = vld [vmem:[#allocation7 + $0x3c] sm:$0xf]
    %v673 = vld [vmem:[#allocation7 + $0x44] sm:$0xf]
    %v674 = vld [vmem:[#allocation7 + $0x4c] sm:$0xf]
    %v675 = vld [vmem:[#allocation7 + $0x54] sm:$0xf]
    %v676 = vld [vmem:[#allocation7 + $0x5c] sm:$0xf]
    %v677 = vld [vmem:[#allocation7 + $0x64] sm:$0xf]
    %v678 = vld [vmem:[#allocation7 + $0x6c] sm:$0xf]
    %v679 = vld [vmem:[#allocation7 + $0x74] sm:$0xf]
    %v680 = vld [vmem:[#allocation7 + $0x7c] sm:$0xf]
    %v681 = vunpack.c.l.bf16 %v665
    %v682 = vunpack.c.l.bf16 %v666
    %v683 = vunpack.c.l.bf16 %v667
    %v684 = vunpack.c.l.bf16 %v668
    %v685 = vunpack.c.l.bf16 %v669
    %v686 = vunpack.c.l.bf16 %v670
    %v687 = vunpack.c.l.bf16 %v671
    %v688 = vunpack.c.l.bf16 %v672
    %v689 = vunpack.c.l.bf16 %v673
    %v690 = vunpack.c.l.bf16 %v674
    %v691 = vunpack.c.l.bf16 %v675
    %v692 = vunpack.c.l.bf16 %v676
    %v693 = vunpack.c.l.bf16 %v677
    %v694 = vunpack.c.l.bf16 %v678
    %v695 = vunpack.c.l.bf16 %v679
    %v696 = vunpack.c.l.bf16 %v680
    %697 = vmatprep.subr.mxu0 0.0
    %698 = vmatpush1.msra.mxu0 %v681
    %699 = vmatprep.subr.mxu0 0.0
    %700 = vmatpush1.msra.mxu0 %v682
    %701 = vmatprep.subr.mxu0 0.0
    %702 = vmatpush1.msra.mxu0 %v683
    %703 = vmatprep.subr.mxu0 0.0
    %704 = vmatpush1.msra.mxu0 %v684
    %705 = vmatprep.subr.mxu0 0.0
    %706 = vmatpush1.msra.mxu0 %v685
    %707 = vmatprep.subr.mxu0 0.0
    %708 = vmatpush1.msra.mxu0 %v686
    %709 = vmatprep.subr.mxu0 0.0
    %710 = vmatpush1.msra.mxu0 %v687
    %711 = vmatprep.subr.mxu0 0.0
    %712 = vmatpush1.msra.mxu0 %v688
    %713 = vmatprep.subr.mxu0 0.0
    %714 = vmatpush1.msra.mxu0 %v689
    %715 = vmatprep.subr.mxu0 0.0
    %716 = vmatpush1.msra.mxu0 %v690
    %717 = vmatprep.subr.mxu0 0.0
    %718 = vmatpush1.msra.mxu0 %v691
    %719 = vmatprep.subr.mxu0 0.0
    %720 = vmatpush1.msra.mxu0 %v692
    %721 = vmatprep.subr.mxu0 0.0
    %722 = vmatpush1.msra.mxu0 %v693
    %723 = vmatprep.subr.mxu0 0.0
    %724 = vmatpush1.msra.mxu0 %v694
    %725 = vmatprep.subr.mxu0 0.0
    %726 = vmatpush1.msra.mxu0 %v695
    %727 = vmatprep.subr.mxu0 0.0
    %728 = vmatpush1.msra.mxu0 %v696
    %729 = vmatprep.subr.mxu0 0.0
    %730 = vmatpush1.msra.mxu0 0.0
    %731 = vmatprep.subr.mxu0 0.0
    %732 = vmatpush1.msra.mxu0 0.0
    %733 = vmatprep.subr.mxu0 0.0
    %734 = vmatpush1.msra.mxu0 0.0
    %735 = vmatprep.subr.mxu0 0.0
    %736 = vmatpush1.msra.mxu0 0.0
    %737 = vmatprep.subr.mxu0 0.0
    %738 = vmatpush1.msra.mxu0 0.0
    %739 = vmatprep.subr.mxu0 0.0
    %740 = vmatpush1.msra.mxu0 0.0
    %741 = vmatprep.subr.mxu0 0.0
    %742 = vmatpush1.msra.mxu0 0.0
    %743 = vmatprep.subr.mxu0 0.0
    %744 = vmatpush1.msra.mxu0 0.0
    %745 = vmatprep.subr.mxu0 0.0
    %746 = vmatpush1.msra.mxu0 0.0
    %747 = vmatprep.subr.mxu0 0.0
    %748 = vmatpush1.msra.mxu0 0.0
    %749 = vmatprep.subr.mxu0 0.0
    %750 = vmatpush1.msra.mxu0 0.0
    %751 = vmatprep.subr.mxu0 0.0
    %752 = vmatpush1.msra.mxu0 0.0
    %753 = vmatprep.subr.mxu0 0.0
    %754 = vmatpush1.msra.mxu0 0.0
    %755 = vmatprep.subr.mxu0 0.0
    %756 = vmatpush1.msra.mxu0 0.0
    %757 = vmatprep.subr.mxu0 0.0
    %758 = vmatpush1.msra.mxu0 0.0
    %759 = vmatprep.subr.mxu0 0.0
    %760 = vmatpush1.msra.mxu0 0.0
    %761 = vmatprep.mubr.f32.mxu0 0.0
    %762 = vmatmul.mubr.f32.gmra.mrb[0].mxu0 %v540
    %v763 = vpop.f32.mrb[0].mxu0
    %v764 = vadd.f32 0.0, %v763
    %v765 = vpop.f32.mrb[0].mxu0
    %766 = vmatprep.mubr.f32.mxu0 0.0
    %767 = vmatmul.mubr.f32.gmra.mrb[0].mxu0 %v541
    %v768 = vpop.f32.mrb[0].mxu0
    %v769 = vadd.f32 0.0, %v768
    %v770 = vpop.f32.mrb[0].mxu0
    %771 = vmatprep.mubr.f32.mxu0 0.0
    %772 = vmatmul.mubr.f32.gmra.mrb[0].mxu0 %v542
    %v773 = vpop.f32.mrb[0].mxu0
    %v774 = vadd.f32 0.0, %v773
    %v775 = vpop.f32.mrb[0].mxu0
    %776 = vmatprep.mubr.f32.mxu0 0.0
    %777 = vmatmul.mubr.f32.gmra.mrb[0].mxu0 %v543
    %v778 = vpop.f32.mrb[0].mxu0
    %v779 = vadd.f32 0.0, %v778
    %v780 = vpop.f32.mrb[0].mxu0
    %781 = vdwg.mxu0
    %v782 = vmul.f32 %v764, %v111
    %v783 = vmul.f32 %v769, %v113
    %v784 = vmul.f32 %v774, %v115
    %v785 = vmul.f32 %v779, %v117
    %v786 = vadd.f32 %v661, %v782
    %v787 = vadd.f32 %v662, %v783
    %v788 = vadd.f32 %v663, %v784
    %v789 = vadd.f32 %v664, %v785
    %794 = vrot.lane.b32.xlu0 %v786, 96
    %v795 = vpop.permute.xlu0 %794
    %796 = vrot.lane.b32.xlu0 %v787, 96
    %v797 = vpop.permute.xlu0 %796
    %798 = vrot.lane.b32.xlu0 %v788, 96
    %v799 = vpop.permute.xlu0 %798
    %800 = vrot.lane.b32.xlu0 %v789, 96
    %v801 = vpop.permute.xlu0 %800
    %v806 = vadd.f32 %v786, %v795
    %v807 = vadd.f32 %v787, %v797
    %v808 = vadd.f32 %v788, %v799
    %v809 = vadd.f32 %v789, %v801
    %810 = vrot.lane.b32.xlu0 %v786, 64
    %v811 = vpop.permute.xlu0 %810
    %812 = vrot.lane.b32.xlu0 %v787, 64
    %v813 = vpop.permute.xlu0 %812
    %814 = vrot.lane.b32.xlu0 %v788, 64
    %v815 = vpop.permute.xlu0 %814
    %816 = vrot.lane.b32.xlu0 %v789, 64
    %v817 = vpop.permute.xlu0 %816
    %v822 = vadd.f32 %v806, %v811
    %v823 = vadd.f32 %v807, %v813
    %v824 = vadd.f32 %v808, %v815
    %v825 = vadd.f32 %v809, %v817
    %826 = vrot.lane.b32.xlu0 %v786, 32
    %v827 = vpop.permute.xlu0 %826
    %828 = vrot.lane.b32.xlu0 %v787, 32
    %v829 = vpop.permute.xlu0 %828
    %830 = vrot.lane.b32.xlu0 %v788, 32
    %v831 = vpop.permute.xlu0 %830
    %832 = vrot.lane.b32.xlu0 %v789, 32
    %v833 = vpop.permute.xlu0 %832
    %v838 = vadd.f32 %v822, %v827
    %v839 = vadd.f32 %v823, %v829
    %v840 = vadd.f32 %v824, %v831
    %v841 = vadd.f32 %v825, %v833
    %v842 = vxor.u32 %v838, 2147483648
    %v843 = vxor.u32 %v839, 2147483648
    %v844 = vxor.u32 %v840, 2147483648
    %v845 = vxor.u32 %v841, 2147483648
    %v846 = vmul.f32 %v842, 1.442695
    %v847 = vpow.pop %v846
    %v848 = vmul.f32 %v843, 1.442695
    %v849 = vpow.pop %v848
    %v850 = vmul.f32 %v844, 1.442695
    %v851 = vpow.pop %v850
    %v852 = vmul.f32 %v845, 1.442695
    %v853 = vpow.pop %v852
    %v854 = vadd.f32 %v847, 1.0
    %v855 = vadd.f32 %v849, 1.0
    %v856 = vadd.f32 %v851, 1.0
    %v857 = vadd.f32 %v853, 1.0
    %v858 = vrcp.pop %v854
    %v859 = vmul.f32 1.0, %v858
    %v860 = vrcp.pop %v855
    %v861 = vmul.f32 1.0, %v860
    %v862 = vrcp.pop %v856
    %v863 = vmul.f32 1.0, %v862
    %v864 = vrcp.pop %v857
    %v865 = vmul.f32 1.0, %v864
    %v866 = vld [vmem:[#allocation8] sm:$0xf]
    %v867 = vld [vmem:[#allocation8 + $0x8] sm:$0xf]
    %v868 = vld [vmem:[#allocation8 + $0x10] sm:$0xf]
    %v869 = vld [vmem:[#allocation8 + $0x18] sm:$0xf]
    %v870 = vld [vmem:[#allocation8 + $0x20] sm:$0xf]
    %v871 = vld [vmem:[#allocation8 + $0x28] sm:$0xf]
    %v872 = vld [vmem:[#allocation8 + $0x30] sm:$0xf]
    %v873 = vld [vmem:[#allocation8 + $0x38] sm:$0xf]
    %v874 = vld [vmem:[#allocation8 + $0x40] sm:$0xf]
    %v875 = vld [vmem:[#allocation8 + $0x48] sm:$0xf]
    %v876 = vld [vmem:[#allocation8 + $0x50] sm:$0xf]
    %v877 = vld [vmem:[#allocation8 + $0x58] sm:$0xf]
    %v878 = vld [vmem:[#allocation8 + $0x60] sm:$0xf]
    %v879 = vld [vmem:[#allocation8 + $0x68] sm:$0xf]
    %v880 = vld [vmem:[#allocation8 + $0x70] sm:$0xf]
    %v881 = vld [vmem:[#allocation8 + $0x78] sm:$0xf]
    %v882 = vunpack.c.l.bf16 %v866
    %v883 = vunpack.c.l.bf16 %v867
    %v884 = vunpack.c.l.bf16 %v868
    %v885 = vunpack.c.l.bf16 %v869
    %v886 = vunpack.c.l.bf16 %v870
    %v887 = vunpack.c.l.bf16 %v871
    %v888 = vunpack.c.l.bf16 %v872
    %v889 = vunpack.c.l.bf16 %v873
    %v890 = vunpack.c.l.bf16 %v874
    %v891 = vunpack.c.l.bf16 %v875
    %v892 = vunpack.c.l.bf16 %v876
    %v893 = vunpack.c.l.bf16 %v877
    %v894 = vunpack.c.l.bf16 %v878
    %v895 = vunpack.c.l.bf16 %v879
    %v896 = vunpack.c.l.bf16 %v880
    %v897 = vunpack.c.l.bf16 %v881
    %898 = vmatprep.subr.mxu0 0.0
    %899 = vmatpush1.msra.mxu0 %v882
    %900 = vmatprep.subr.mxu0 0.0
    %901 = vmatpush1.msra.mxu0 %v883
    %902 = vmatprep.subr.mxu0 0.0
    %903 = vmatpush1.msra.mxu0 %v884
    %904 = vmatprep.subr.mxu0 0.0
    %905 = vmatpush1.msra.mxu0 %v885
    %906 = vmatprep.subr.mxu0 0.0
    %907 = vmatpush1.msra.mxu0 %v886
    %908 = vmatprep.subr.mxu0 0.0
    %909 = vmatpush1.msra.mxu0 %v887
    %910 = vmatprep.subr.mxu0 0.0
    %911 = vmatpush1.msra.mxu0 %v888
    %912 = vmatprep.subr.mxu0 0.0
    %913 = vmatpush1.msra.mxu0 %v889
    %914 = vmatprep.subr.mxu0 0.0
    %915 = vmatpush1.msra.mxu0 %v890
    %916 = vmatprep.subr.mxu0 0.0
    %917 = vmatpush1.msra.mxu0 %v891
    %918 = vmatprep.subr.mxu0 0.0
    %919 = vmatpush1.msra.mxu0 %v892
    %920 = vmatprep.subr.mxu0 0.0
    %921 = vmatpush1.msra.mxu0 %v893
    %922 = vmatprep.subr.mxu0 0.0
    %923 = vmatpush1.msra.mxu0 %v894
    %924 = vmatprep.subr.mxu0 0.0
    %925 = vmatpush1.msra.mxu0 %v895
    %926 = vmatprep.subr.mxu0 0.0
    %927 = vmatpush1.msra.mxu0 %v896
    %928 = vmatprep.subr.mxu0 0.0
    %929 = vmatpush1.msra.mxu0 %v897
    %930 = vmatprep.subr.mxu0 0.0
    %931 = vmatpush1.msra.mxu0 0.0
    %932 = vmatprep.subr.mxu0 0.0
    %933 = vmatpush1.msra.mxu0 0.0
    %934 = vmatprep.subr.mxu0 0.0
    %935 = vmatpush1.msra.mxu0 0.0
    %936 = vmatprep.subr.mxu0 0.0
    %937 = vmatpush1.msra.mxu0 0.0
    %938 = vmatprep.subr.mxu0 0.0
    %939 = vmatpush1.msra.mxu0 0.0
    %940 = vmatprep.subr.mxu0 0.0
    %941 = vmatpush1.msra.mxu0 0.0
    %942 = vmatprep.subr.mxu0 0.0
    %943 = vmatpush1.msra.mxu0 0.0
    %944 = vmatprep.subr.mxu0 0.0
    %945 = vmatpush1.msra.mxu0 0.0
    %946 = vmatprep.subr.mxu0 0.0
    %947 = vmatpush1.msra.mxu0 0.0
    %948 = vmatprep.subr.mxu0 0.0
    %949 = vmatpush1.msra.mxu0 0.0
    %950 = vmatprep.subr.mxu0 0.0
    %951 = vmatpush1.msra.mxu0 0.0
    %952 = vmatprep.subr.mxu0 0.0
    %953 = vmatpush1.msra.mxu0 0.0
    %954 = vmatprep.subr.mxu0 0.0
    %955 = vmatpush1.msra.mxu0 0.0
    %956 = vmatprep.subr.mxu0 0.0
    %957 = vmatpush1.msra.mxu0 0.0
    %958 = vmatprep.subr.mxu0 0.0
    %959 = vmatpush1.msra.mxu0 0.0
    %960 = vmatprep.subr.mxu0 0.0
    %961 = vmatpush1.msra.mxu0 0.0
    %962 = vmatprep.mubr.f32.mxu0 0.0
    %963 = vmatmul.mubr.f32.gmra.mrb[0].mxu0 %v540
    %v964 = vpop.f32.mrb[0].mxu0
    %v965 = vadd.f32 0.0, %v964
    %v966 = vpop.f32.mrb[0].mxu0
    %967 = vmatprep.mubr.f32.mxu0 0.0
    %968 = vmatmul.mubr.f32.gmra.mrb[0].mxu0 %v541
    %v969 = vpop.f32.mrb[0].mxu0
    %v970 = vadd.f32 0.0, %v969
    %v971 = vpop.f32.mrb[0].mxu0
    %972 = vmatprep.mubr.f32.mxu0 0.0
    %973 = vmatmul.mubr.f32.gmra.mrb[0].mxu0 %v542
    %v974 = vpop.f32.mrb[0].mxu0
    %v975 = vadd.f32 0.0, %v974
    %v976 = vpop.f32.mrb[0].mxu0
    %977 = vmatprep.mubr.f32.mxu0 0.0
    %978 = vmatmul.mubr.f32.gmra.mrb[0].mxu0 %v543
    %v979 = vpop.f32.mrb[0].mxu0
    %v980 = vadd.f32 0.0, %v979
    %v981 = vpop.f32.mrb[0].mxu0
    %982 = vdwg.mxu0
    %v983 = vmul.f32 %v965, %v110
    %v984 = vmul.f32 %v970, %v112
    %v985 = vmul.f32 %v975, %v114
    %v986 = vmul.f32 %v980, %v116
    %v987 = vld [vmem:[#allocation8 + $0x4] sm:$0xf]
    %v988 = vld [vmem:[#allocation8 + $0xc] sm:$0xf]
    %v989 = vld [vmem:[#allocation8 + $0x14] sm:$0xf]
    %v990 = vld [vmem:[#allocation8 + $0x1c] sm:$0xf]
    %v991 = vld [vmem:[#allocation8 + $0x24] sm:$0xf]
    %v992 = vld [vmem:[#allocation8 + $0x2c] sm:$0xf]
    %v993 = vld [vmem:[#allocation8 + $0x34] sm:$0xf]
    %v994 = vld [vmem:[#allocation8 + $0x3c] sm:$0xf]
    %v995 = vld [vmem:[#allocation8 + $0x44] sm:$0xf]
    %v996 = vld [vmem:[#allocation8 + $0x4c] sm:$0xf]
    %v997 = vld [vmem:[#allocation8 + $0x54] sm:$0xf]
    %v998 = vld [vmem:[#allocation8 + $0x5c] sm:$0xf]
    %v999 = vld [vmem:[#allocation8 + $0x64] sm:$0xf]
    %v1000 = vld [vmem:[#allocation8 + $0x6c] sm:$0xf]
    %v1001 = vld [vmem:[#allocation8 + $0x74] sm:$0xf]
    %v1002 = vld [vmem:[#allocation8 + $0x7c] sm:$0xf]
    %v1003 = vunpack.c.l.bf16 %v987
    %v1004 = vunpack.c.l.bf16 %v988
    %v1005 = vunpack.c.l.bf16 %v989
    %v1006 = vunpack.c.l.bf16 %v990
    %v1007 = vunpack.c.l.bf16 %v991
    %v1008 = vunpack.c.l.bf16 %v992
    %v1009 = vunpack.c.l.bf16 %v993
    %v1010 = vunpack.c.l.bf16 %v994
    %v1011 = vunpack.c.l.bf16 %v995
    %v1012 = vunpack.c.l.bf16 %v996
    %v1013 = vunpack.c.l.bf16 %v997
    %v1014 = vunpack.c.l.bf16 %v998
    %v1015 = vunpack.c.l.bf16 %v999
    %v1016 = vunpack.c.l.bf16 %v1000
    %v1017 = vunpack.c.l.bf16 %v1001
    %v1018 = vunpack.c.l.bf16 %v1002
    %1019 = vmatprep.subr.mxu0 0.0
    %1020 = vmatpush1.msra.mxu0 %v1003
    %1021 = vmatprep.subr.mxu0 0.0
    %1022 = vmatpush1.msra.mxu0 %v1004
    %1023 = vmatprep.subr.mxu0 0.0
    %1024 = vmatpush1.msra.mxu0 %v1005
    %1025 = vmatprep.subr.mxu0 0.0
    %1026 = vmatpush1.msra.mxu0 %v1006
    %1027 = vmatprep.subr.mxu0 0.0
    %1028 = vmatpush1.msra.mxu0 %v1007
    %1029 = vmatprep.subr.mxu0 0.0
    %1030 = vmatpush1.msra.mxu0 %v1008
    %1031 = vmatprep.subr.mxu0 0.0
    %1032 = vmatpush1.msra.mxu0 %v1009
    %1033 = vmatprep.subr.mxu0 0.0
    %1034 = vmatpush1.msra.mxu0 %v1010
    %1035 = vmatprep.subr.mxu0 0.0
    %1036 = vmatpush1.msra.mxu0 %v1011
    %1037 = vmatprep.subr.mxu0 0.0
    %1038 = vmatpush1.msra.mxu0 %v1012
    %1039 = vmatprep.subr.mxu0 0.0
    %1040 = vmatpush1.msra.mxu0 %v1013
    %1041 = vmatprep.subr.mxu0 0.0
    %1042 = vmatpush1.msra.mxu0 %v1014
    %1043 = vmatprep.subr.mxu0 0.0
    %1044 = vmatpush1.msra.mxu0 %v1015
    %1045 = vmatprep.subr.mxu0 0.0
    %1046 = vmatpush1.msra.mxu0 %v1016
    %1047 = vmatprep.subr.mxu0 0.0
    %1048 = vmatpush1.msra.mxu0 %v1017
    %1049 = vmatprep.subr.mxu0 0.0
    %1050 = vmatpush1.msra.mxu0 %v1018
    %1051 = vmatprep.subr.mxu0 0.0
    %1052 = vmatpush1.msra.mxu0 0.0
    %1053 = vmatprep.subr.mxu0 0.0
    %1054 = vmatpush1.msra.mxu0 0.0
    %1055 = vmatprep.subr.mxu0 0.0
    %1056 = vmatpush1.msra.mxu0 0.0
    %1057 = vmatprep.subr.mxu0 0.0
    %1058 = vmatpush1.msra.mxu0 0.0
    %1059 = vmatprep.subr.mxu0 0.0
    %1060 = vmatpush1.msra.mxu0 0.0
    %1061 = vmatprep.subr.mxu0 0.0
    %1062 = vmatpush1.msra.mxu0 0.0
    %1063 = vmatprep.subr.mxu0 0.0
    %1064 = vmatpush1.msra.mxu0 0.0
    %1065 = vmatprep.subr.mxu0 0.0
    %1066 = vmatpush1.msra.mxu0 0.0
    %1067 = vmatprep.subr.mxu0 0.0
    %1068 = vmatpush1.msra.mxu0 0.0
    %1069 = vmatprep.subr.mxu0 0.0
    %1070 = vmatpush1.msra.mxu0 0.0
    %1071 = vmatprep.subr.mxu0 0.0
    %1072 = vmatpush1.msra.mxu0 0.0
    %1073 = vmatprep.subr.mxu0 0.0
    %1074 = vmatpush1.msra.mxu0 0.0
    %1075 = vmatprep.subr.mxu0 0.0
    %1076 = vmatpush1.msra.mxu0 0.0
    %1077 = vmatprep.subr.mxu0 0.0
    %1078 = vmatpush1.msra.mxu0 0.0
    %1079 = vmatprep.subr.mxu0 0.0
    %1080 = vmatpush1.msra.mxu0 0.0
    %1081 = vmatprep.subr.mxu0 0.0
    %1082 = vmatpush1.msra.mxu0 0.0
    %1083 = vmatprep.mubr.f32.mxu0 0.0
    %1084 = vmatmul.mubr.f32.gmra.mrb[0].mxu0 %v540
    %v1085 = vpop.f32.mrb[0].mxu0
    %v1086 = vadd.f32 0.0, %v1085
    %v1087 = vpop.f32.mrb[0].mxu0
    %1088 = vmatprep.mubr.f32.mxu0 0.0
    %1089 = vmatmul.mubr.f32.gmra.mrb[0].mxu0 %v541
    %v1090 = vpop.f32.mrb[0].mxu0
    %v1091 = vadd.f32 0.0, %v1090
    %v1092 = vpop.f32.mrb[0].mxu0
    %1093 = vmatprep.mubr.f32.mxu0 0.0
    %1094 = vmatmul.mubr.f32.gmra.mrb[0].mxu0 %v542
    %v1095 = vpop.f32.mrb[0].mxu0
    %v1096 = vadd.f32 0.0, %v1095
    %v1097 = vpop.f32.mrb[0].mxu0
    %1098 = vmatprep.mubr.f32.mxu0 0.0
    %1099 = vmatmul.mubr.f32.gmra.mrb[0].mxu0 %v543
    %v1100 = vpop.f32.mrb[0].mxu0
    %v1101 = vadd.f32 0.0, %v1100
    %v1102 = vpop.f32.mrb[0].mxu0
    %1103 = vdwg.mxu0
    %v1104 = vmul.f32 %v1086, %v111
    %v1105 = vmul.f32 %v1091, %v113
    %v1106 = vmul.f32 %v1096, %v115
    %v1107 = vmul.f32 %v1101, %v117
    %v1108 = vadd.f32 %v983, %v1104
    %v1109 = vadd.f32 %v984, %v1105
    %v1110 = vadd.f32 %v985, %v1106
    %v1111 = vadd.f32 %v986, %v1107
    %1116 = vrot.lane.b32.xlu0 %v1108, 96
    %v1117 = vpop.permute.xlu0 %1116
    %1118 = vrot.lane.b32.xlu0 %v1109, 96
    %v1119 = vpop.permute.xlu0 %1118
    %1120 = vrot.lane.b32.xlu0 %v1110, 96
    %v1121 = vpop.permute.xlu0 %1120
    %1122 = vrot.lane.b32.xlu0 %v1111, 96
    %v1123 = vpop.permute.xlu0 %1122
    %v1128 = vadd.f32 %v1108, %v1117
    %v1129 = vadd.f32 %v1109, %v1119
    %v1130 = vadd.f32 %v1110, %v1121
    %v1131 = vadd.f32 %v1111, %v1123
    %1132 = vrot.lane.b32.xlu0 %v1108, 64
    %v1133 = vpop.permute.xlu0 %1132
    %1134 = vrot.lane.b32.xlu0 %v1109, 64
    %v1135 = vpop.permute.xlu0 %1134
    %1136 = vrot.lane.b32.xlu0 %v1110, 64
    %v1137 = vpop.permute.xlu0 %1136
    %1138 = vrot.lane.b32.xlu0 %v1111, 64
    %v1139 = vpop.permute.xlu0 %1138
    %v1144 = vadd.f32 %v1128, %v1133
    %v1145 = vadd.f32 %v1129, %v1135
    %v1146 = vadd.f32 %v1130, %v1137
    %v1147 = vadd.f32 %v1131, %v1139
    %1148 = vrot.lane.b32.xlu0 %v1108, 32
    %v1149 = vpop.permute.xlu0 %1148
    %1150 = vrot.lane.b32.xlu0 %v1109, 32
    %v1151 = vpop.permute.xlu0 %1150
    %1152 = vrot.lane.b32.xlu0 %v1110, 32
    %v1153 = vpop.permute.xlu0 %1152
    %1154 = vrot.lane.b32.xlu0 %v1111, 32
    %v1155 = vpop.permute.xlu0 %1154
    %v1160 = vadd.f32 %v1144, %v1149
    %v1161 = vadd.f32 %v1145, %v1151
    %v1162 = vadd.f32 %v1146, %v1153
    %v1163 = vadd.f32 %v1147, %v1155
    %v1164 = vxor.u32 %v1160, 2147483648
    %v1165 = vxor.u32 %v1161, 2147483648
    %v1166 = vxor.u32 %v1162, 2147483648
    %v1167 = vxor.u32 %v1163, 2147483648
    %v1168 = vmul.f32 %v1164, 1.442695
    %v1169 = vpow.pop %v1168
    %v1170 = vmul.f32 %v1165, 1.442695
    %v1171 = vpow.pop %v1170
    %v1172 = vmul.f32 %v1166, 1.442695
    %v1173 = vpow.pop %v1172
    %v1174 = vmul.f32 %v1167, 1.442695
    %v1175 = vpow.pop %v1174
    %v1176 = vadd.f32 %v1169, 1.0
    %v1177 = vadd.f32 %v1171, 1.0
    %v1178 = vadd.f32 %v1173, 1.0
    %v1179 = vadd.f32 %v1175, 1.0
    %v1180 = vrcp.pop %v1176
    %v1181 = vmul.f32 1.0, %v1180
    %v1182 = vrcp.pop %v1177
    %v1183 = vmul.f32 1.0, %v1182
    %v1184 = vrcp.pop %v1178
    %v1185 = vmul.f32 1.0, %v1184
    %v1186 = vrcp.pop %v1179
    %v1187 = vmul.f32 1.0, %v1186
    %v1188 = vmul.f32 %v859, %v102
    %v1189 = vmul.f32 %v861, %v103
    %v1190 = vmul.f32 %v863, %v104
    %v1191 = vmul.f32 %v865, %v105
    %1196 = vrot.lane.b32.xlu0 %v1188, 4
    %v1197 = vpop.permute.xlu0 %1196
    %1198 = vrot.lane.b32.xlu0 %v1189, 4
    %v1199 = vpop.permute.xlu0 %1198
    %1200 = vrot.lane.b32.xlu0 %v1190, 4
    %v1201 = vpop.permute.xlu0 %1200
    %1202 = vrot.lane.b32.xlu0 %v1191, 4
    %v1203 = vpop.permute.xlu0 %1202
    %v1208 = vsel %vm298, %v98, %v1197
    %v1209 = vsel %vm298, %v99, %v1199
    %v1210 = vsel %vm298, %v100, %v1201
    %v1211 = vsel %vm298, %v101, %v1203
    %1212 = vmatprep.subr.mxu0 0.0
    %1213 = vmatpush1.msra.mxu0 %v1208
    %1214 = vmatprep.subr.mxu0 0.0
    %1215 = vmatpush1.msra.mxu0 %v1209
    %1216 = vmatprep.subr.mxu0 0.0
    %1217 = vmatpush1.msra.mxu0 %v1210
    %1218 = vmatprep.subr.mxu0 0.0
    %1219 = vmatpush1.msra.mxu0 %v1211
    %1220 = vmatprep.subr.mxu0 0.0
    %1221 = vmatpush1.msra.mxu0 0.0
    %1222 = vmatprep.subr.mxu0 0.0
    %1223 = vmatpush1.msra.mxu0 0.0
    %1224 = vmatprep.subr.mxu0 0.0
    %1225 = vmatpush1.msra.mxu0 0.0
    %1226 = vmatprep.subr.mxu0 0.0
    %1227 = vmatpush1.msra.mxu0 0.0
    %1228 = vmatprep.subr.mxu0 0.0
    %1229 = vmatpush1.msra.mxu0 0.0
    %1230 = vmatprep.subr.mxu0 0.0
    %1231 = vmatpush1.msra.mxu0 0.0
    %1232 = vmatprep.subr.mxu0 0.0
    %1233 = vmatpush1.msra.mxu0 0.0
    %1234 = vmatprep.subr.mxu0 0.0
    %1235 = vmatpush1.msra.mxu0 0.0
    %1236 = vmatprep.subr.mxu0 0.0
    %1237 = vmatpush1.msra.mxu0 0.0
    %1238 = vmatprep.subr.mxu0 0.0
    %1239 = vmatpush1.msra.mxu0 0.0
    %1240 = vmatprep.subr.mxu0 0.0
    %1241 = vmatpush1.msra.mxu0 0.0
    %1242 = vmatprep.subr.mxu0 0.0
    %1243 = vmatpush1.msra.mxu0 0.0
    %1244 = vmatprep.subr.mxu0 0.0
    %1245 = vmatpush1.msra.mxu0 0.0
    %1246 = vmatprep.subr.mxu0 0.0
    %1247 = vmatpush1.msra.mxu0 0.0
    %1248 = vmatprep.subr.mxu0 0.0
    %1249 = vmatpush1.msra.mxu0 0.0
    %1250 = vmatprep.subr.mxu0 0.0
    %1251 = vmatpush1.msra.mxu0 0.0
    %1252 = vmatprep.subr.mxu0 0.0
    %1253 = vmatpush1.msra.mxu0 0.0
    %1254 = vmatprep.subr.mxu0 0.0
    %1255 = vmatpush1.msra.mxu0 0.0
    %1256 = vmatprep.subr.mxu0 0.0
    %1257 = vmatpush1.msra.mxu0 0.0
    %1258 = vmatprep.subr.mxu0 0.0
    %1259 = vmatpush1.msra.mxu0 0.0
    %1260 = vmatprep.subr.mxu0 0.0
    %1261 = vmatpush1.msra.mxu0 0.0
    %1262 = vmatprep.subr.mxu0 0.0
    %1263 = vmatpush1.msra.mxu0 0.0
    %1264 = vmatprep.subr.mxu0 0.0
    %1265 = vmatpush1.msra.mxu0 0.0
    %1266 = vmatprep.subr.mxu0 0.0
    %1267 = vmatpush1.msra.mxu0 0.0
    %1268 = vmatprep.subr.mxu0 0.0
    %1269 = vmatpush1.msra.mxu0 0.0
    %1270 = vmatprep.subr.mxu0 0.0
    %1271 = vmatpush1.msra.mxu0 0.0
    %1272 = vmatprep.subr.mxu0 0.0
    %1273 = vmatpush1.msra.mxu0 0.0
    %1274 = vmatprep.subr.mxu0 0.0
    %1275 = vmatpush1.msra.mxu0 0.0
    %1276 = vmatprep.mubr.f32.mxu0 0.0
    %1277 = vmatmul.mubr.f32.gmra.mrb[0].mxu0 %v304
    %v1278 = vpop.f32.mrb[0].mxu0
    %v1279 = vadd.f32 0.0, %v1278
    %v1280 = vpop.f32.mrb[0].mxu0
    %1281 = vmatprep.mubr.f32.mxu0 0.0
    %1282 = vmatmul.mubr.f32.gmra.mrb[0].mxu0 %v307
    %v1283 = vpop.f32.mrb[0].mxu0
    %v1284 = vadd.f32 0.0, %v1283
    %v1285 = vpop.f32.mrb[0].mxu0
    %1286 = vmatprep.mubr.f32.mxu0 0.0
    %1287 = vmatmul.mubr.f32.gmra.mrb[0].mxu0 %v310
    %v1288 = vpop.f32.mrb[0].mxu0
    %v1289 = vadd.f32 0.0, %v1288
    %v1290 = vpop.f32.mrb[0].mxu0
    %1291 = vmatprep.mubr.f32.mxu0 0.0
    %1292 = vmatmul.mubr.f32.gmra.mrb[0].mxu0 %v313
    %v1293 = vpop.f32.mrb[0].mxu0
    %v1294 = vadd.f32 0.0, %v1293
    %v1295 = vpop.f32.mrb[0].mxu0
    %1296 = vdwg.mxu0
    %1297 = vmatprep.subr.mxu0 0.0
    %1298 = vmatpush1.msra.mxu0 %v1279
    %1299 = vmatprep.subr.mxu0 0.0
    %1300 = vmatpush1.msra.mxu0 %v1284
    %1301 = vmatprep.subr.mxu0 0.0
    %1302 = vmatpush1.msra.mxu0 %v1289
    %1303 = vmatprep.subr.mxu0 0.0
    %1304 = vmatpush1.msra.mxu0 %v1294
    %1305 = vmatprep.subr.mxu0 0.0
    %1306 = vmatpush1.msra.mxu0 0.0
    %1307 = vmatprep.subr.mxu0 0.0
    %1308 = vmatpush1.msra.mxu0 0.0
    %1309 = vmatprep.subr.mxu0 0.0
    %1310 = vmatpush1.msra.mxu0 0.0
    %1311 = vmatprep.subr.mxu0 0.0
    %1312 = vmatpush1.msra.mxu0 0.0
    %1313 = vmatprep.subr.mxu0 0.0
    %1314 = vmatpush1.msra.mxu0 0.0
    %1315 = vmatprep.subr.mxu0 0.0
    %1316 = vmatpush1.msra.mxu0 0.0
    %1317 = vmatprep.subr.mxu0 0.0
    %1318 = vmatpush1.msra.mxu0 0.0
    %1319 = vmatprep.subr.mxu0 0.0
    %1320 = vmatpush1.msra.mxu0 0.0
    %1321 = vmatprep.subr.mxu0 0.0
    %1322 = vmatpush1.msra.mxu0 0.0
    %1323 = vmatprep.subr.mxu0 0.0
    %1324 = vmatpush1.msra.mxu0 0.0
    %1325 = vmatprep.subr.mxu0 0.0
    %1326 = vmatpush1.msra.mxu0 0.0
    %1327 = vmatprep.subr.mxu0 0.0
    %1328 = vmatpush1.msra.mxu0 0.0
    %1329 = vmatprep.subr.mxu0 0.0
    %1330 = vmatpush1.msra.mxu0 0.0
    %1331 = vmatprep.subr.mxu0 0.0
    %1332 = vmatpush1.msra.mxu0 0.0
    %1333 = vmatprep.subr.mxu0 0.0
    %1334 = vmatpush1.msra.mxu0 0.0
    %1335 = vmatprep.subr.mxu0 0.0
    %1336 = vmatpush1.msra.mxu0 0.0
    %1337 = vmatprep.subr.mxu0 0.0
    %1338 = vmatpush1.msra.mxu0 0.0
    %1339 = vmatprep.subr.mxu0 0.0
    %1340 = vmatpush1.msra.mxu0 0.0
    %1341 = vmatprep.subr.mxu0 0.0
    %1342 = vmatpush1.msra.mxu0 0.0
    %1343 = vmatprep.subr.mxu0 0.0
    %1344 = vmatpush1.msra.mxu0 0.0
    %1345 = vmatprep.subr.mxu0 0.0
    %1346 = vmatpush1.msra.mxu0 0.0
    %1347 = vmatprep.subr.mxu0 0.0
    %1348 = vmatpush1.msra.mxu0 0.0
    %1349 = vmatprep.subr.mxu0 0.0
    %1350 = vmatpush1.msra.mxu0 0.0
    %1351 = vmatprep.subr.mxu0 0.0
    %1352 = vmatpush1.msra.mxu0 0.0
    %1353 = vmatprep.subr.mxu0 0.0
    %1354 = vmatpush1.msra.mxu0 0.0
    %1355 = vmatprep.subr.mxu0 0.0
    %1356 = vmatpush1.msra.mxu0 0.0
    %1357 = vmatprep.subr.mxu0 0.0
    %1358 = vmatpush1.msra.mxu0 0.0
    %1359 = vmatprep.subr.mxu0 0.0
    %1360 = vmatpush1.msra.mxu0 0.0
    %1361 = vmatprep.mubr.f32.mxu0 0.0
    %1362 = vmatmul.mubr.f32.gmra.mrb[0].mxu0 %v304
    %v1363 = vpop.f32.mrb[0].mxu0
    %v1364 = vadd.f32 0.0, %v1363
    %v1365 = vpop.f32.mrb[0].mxu0
    %1366 = vmatprep.mubr.f32.mxu0 0.0
    %1367 = vmatmul.mubr.f32.gmra.mrb[0].mxu0 %v307
    %v1368 = vpop.f32.mrb[0].mxu0
    %v1369 = vadd.f32 0.0, %v1368
    %v1370 = vpop.f32.mrb[0].mxu0
    %1371 = vmatprep.mubr.f32.mxu0 0.0
    %1372 = vmatmul.mubr.f32.gmra.mrb[0].mxu0 %v310
    %v1373 = vpop.f32.mrb[0].mxu0
    %v1374 = vadd.f32 0.0, %v1373
    %v1375 = vpop.f32.mrb[0].mxu0
    %1376 = vmatprep.mubr.f32.mxu0 0.0
    %1377 = vmatmul.mubr.f32.gmra.mrb[0].mxu0 %v313
    %v1378 = vpop.f32.mrb[0].mxu0
    %v1379 = vadd.f32 0.0, %v1378
    %v1380 = vpop.f32.mrb[0].mxu0
    %1381 = vdwg.mxu0
    %v1382 = vmul.f32 %v1364, 2.0
    %v1383 = vmul.f32 %v1369, 2.0
    %v1384 = vmul.f32 %v1374, 2.0
    %v1385 = vmul.f32 %v1379, 2.0
    %v1386 = vsub.f32 %v1382, %v1208
    %v1387 = vsub.f32 %v1383, %v1209
    %v1388 = vsub.f32 %v1384, %v1210
    %v1389 = vsub.f32 %v1385, %v1211
    %1394 = vrot.lane.b32.xlu0 %v1279, 36
    %v1395 = vpop.permute.xlu0 %1394
    %1396 = vrot.lane.b32.xlu0 %v1284, 36
    %v1397 = vpop.permute.xlu0 %1396
    %1398 = vrot.lane.b32.xlu0 %v1289, 36
    %v1399 = vpop.permute.xlu0 %1398
    %1400 = vrot.lane.b32.xlu0 %v1294, 36
    %v1401 = vpop.permute.xlu0 %1400
    %1410 = vrot.lane.b32.xlu0 %v1386, 72
    %v1411 = vpop.permute.xlu0 %1410
    %1412 = vrot.lane.b32.xlu0 %v1387, 72
    %v1413 = vpop.permute.xlu0 %1412
    %1414 = vrot.lane.b32.xlu0 %v1388, 72
    %v1415 = vpop.permute.xlu0 %1414
    %1416 = vrot.lane.b32.xlu0 %v1389, 72
    %v1417 = vpop.permute.xlu0 %1416
    %v1422 = vsel %vm529, %v1208, %v1395
    %v1423 = vsel %vm529, %v1209, %v1397
    %v1424 = vsel %vm529, %v1210, %v1399
    %v1425 = vsel %vm529, %v1211, %v1401
    %v1426 = vsel %vm534, %v1422, %v1411
    %v1427 = vsel %vm534, %v1423, %v1413
    %v1428 = vsel %vm534, %v1424, %v1415
    %v1429 = vsel %vm534, %v1425, %v1417
    %v1430 = vsel %vm539, %v1426, %v527
    %v1431 = vsel %vm539, %v1427, %v527
    %v1432 = vsel %vm539, %v1428, %v527
    %v1433 = vsel %vm539, %v1429, %v527
    %v1434 = vld [vmem:[#allocation10] sm:$0xf]
    %v1435 = vld [vmem:[#allocation10 + $0x8] sm:$0xf]
    %v1436 = vld [vmem:[#allocation10 + $0x10] sm:$0xf]
    %v1437 = vld [vmem:[#allocation10 + $0x18] sm:$0xf]
    %v1438 = vld [vmem:[#allocation10 + $0x20] sm:$0xf]
    %v1439 = vld [vmem:[#allocation10 + $0x28] sm:$0xf]
    %v1440 = vld [vmem:[#allocation10 + $0x30] sm:$0xf]
    %v1441 = vld [vmem:[#allocation10 + $0x38] sm:$0xf]
    %v1442 = vld [vmem:[#allocation10 + $0x40] sm:$0xf]
    %v1443 = vld [vmem:[#allocation10 + $0x48] sm:$0xf]
    %v1444 = vld [vmem:[#allocation10 + $0x50] sm:$0xf]
    %v1445 = vld [vmem:[#allocation10 + $0x58] sm:$0xf]
    %v1446 = vld [vmem:[#allocation10 + $0x60] sm:$0xf]
    %v1447 = vld [vmem:[#allocation10 + $0x68] sm:$0xf]
    %v1448 = vld [vmem:[#allocation10 + $0x70] sm:$0xf]
    %v1449 = vld [vmem:[#allocation10 + $0x78] sm:$0xf]
    %v1450 = vunpack.c.l.bf16 %v1434
    %v1451 = vunpack.c.l.bf16 %v1435
    %v1452 = vunpack.c.l.bf16 %v1436
    %v1453 = vunpack.c.l.bf16 %v1437
    %v1454 = vunpack.c.l.bf16 %v1438
    %v1455 = vunpack.c.l.bf16 %v1439
    %v1456 = vunpack.c.l.bf16 %v1440
    %v1457 = vunpack.c.l.bf16 %v1441
    %v1458 = vunpack.c.l.bf16 %v1442
    %v1459 = vunpack.c.l.bf16 %v1443
    %v1460 = vunpack.c.l.bf16 %v1444
    %v1461 = vunpack.c.l.bf16 %v1445
    %v1462 = vunpack.c.l.bf16 %v1446
    %v1463 = vunpack.c.l.bf16 %v1447
    %v1464 = vunpack.c.l.bf16 %v1448
    %v1465 = vunpack.c.l.bf16 %v1449
    %1466 = vmatprep.subr.mxu0 0.0
    %1467 = vmatpush1.msra.mxu0 %v1450
    %1468 = vmatprep.subr.mxu0 0.0
    %1469 = vmatpush1.msra.mxu0 %v1451
    %1470 = vmatprep.subr.mxu0 0.0
    %1471 = vmatpush1.msra.mxu0 %v1452
    %1472 = vmatprep.subr.mxu0 0.0
    %1473 = vmatpush1.msra.mxu0 %v1453
    %1474 = vmatprep.subr.mxu0 0.0
    %1475 = vmatpush1.msra.mxu0 %v1454
    %1476 = vmatprep.subr.mxu0 0.0
    %1477 = vmatpush1.msra.mxu0 %v1455
    %1478 = vmatprep.subr.mxu0 0.0
    %1479 = vmatpush1.msra.mxu0 %v1456
    %1480 = vmatprep.subr.mxu0 0.0
    %1481 = vmatpush1.msra.mxu0 %v1457
    %1482 = vmatprep.subr.mxu0 0.0
    %1483 = vmatpush1.msra.mxu0 %v1458
    %1484 = vmatprep.subr.mxu0 0.0
    %1485 = vmatpush1.msra.mxu0 %v1459
    %1486 = vmatprep.subr.mxu0 0.0
    %1487 = vmatpush1.msra.mxu0 %v1460
    %1488 = vmatprep.subr.mxu0 0.0
    %1489 = vmatpush1.msra.mxu0 %v1461
    %1490 = vmatprep.subr.mxu0 0.0
    %1491 = vmatpush1.msra.mxu0 %v1462
    %1492 = vmatprep.subr.mxu0 0.0
    %1493 = vmatpush1.msra.mxu0 %v1463
    %1494 = vmatprep.subr.mxu0 0.0
    %1495 = vmatpush1.msra.mxu0 %v1464
    %1496 = vmatprep.subr.mxu0 0.0
    %1497 = vmatpush1.msra.mxu0 %v1465
    %1498 = vmatprep.subr.mxu0 0.0
    %1499 = vmatpush1.msra.mxu0 0.0
    %1500 = vmatprep.subr.mxu0 0.0
    %1501 = vmatpush1.msra.mxu0 0.0
    %1502 = vmatprep.subr.mxu0 0.0
    %1503 = vmatpush1.msra.mxu0 0.0
    %1504 = vmatprep.subr.mxu0 0.0
    %1505 = vmatpush1.msra.mxu0 0.0
    %1506 = vmatprep.subr.mxu0 0.0
    %1507 = vmatpush1.msra.mxu0 0.0
    %1508 = vmatprep.subr.mxu0 0.0
    %1509 = vmatpush1.msra.mxu0 0.0
    %1510 = vmatprep.subr.mxu0 0.0
    %1511 = vmatpush1.msra.mxu0 0.0
    %1512 = vmatprep.subr.mxu0 0.0
    %1513 = vmatpush1.msra.mxu0 0.0
    %1514 = vmatprep.subr.mxu0 0.0
    %1515 = vmatpush1.msra.mxu0 0.0
    %1516 = vmatprep.subr.mxu0 0.0
    %1517 = vmatpush1.msra.mxu0 0.0
    %1518 = vmatprep.subr.mxu0 0.0
    %1519 = vmatpush1.msra.mxu0 0.0
    %1520 = vmatprep.subr.mxu0 0.0
    %1521 = vmatpush1.msra.mxu0 0.0
    %1522 = vmatprep.subr.mxu0 0.0
    %1523 = vmatpush1.msra.mxu0 0.0
    %1524 = vmatprep.subr.mxu0 0.0
    %1525 = vmatpush1.msra.mxu0 0.0
    %1526 = vmatprep.subr.mxu0 0.0
    %1527 = vmatpush1.msra.mxu0 0.0
    %1528 = vmatprep.subr.mxu0 0.0
    %1529 = vmatpush1.msra.mxu0 0.0
    %1530 = vmatprep.mubr.f32.mxu0 0.0
    %1531 = vmatmul.mubr.f32.gmra.mrb[0].mxu0 %v1430
    %v1532 = vpop.f32.mrb[0].mxu0
    %v1533 = vadd.f32 0.0, %v1532
    %v1534 = vpop.f32.mrb[0].mxu0
    %1535 = vmatprep.mubr.f32.mxu0 0.0
    %1536 = vmatmul.mubr.f32.gmra.mrb[0].mxu0 %v1431
    %v1537 = vpop.f32.mrb[0].mxu0
    %v1538 = vadd.f32 0.0, %v1537
    %v1539 = vpop.f32.mrb[0].mxu0
    %1540 = vmatprep.mubr.f32.mxu0 0.0
    %1541 = vmatmul.mubr.f32.gmra.mrb[0].mxu0 %v1432
    %v1542 = vpop.f32.mrb[0].mxu0
    %v1543 = vadd.f32 0.0, %v1542
    %v1544 = vpop.f32.mrb[0].mxu0
    %1545 = vmatprep.mubr.f32.mxu0 0.0
    %1546 = vmatmul.mubr.f32.gmra.mrb[0].mxu0 %v1433
    %v1547 = vpop.f32.mrb[0].mxu0
    %v1548 = vadd.f32 0.0, %v1547
    %v1549 = vpop.f32.mrb[0].mxu0
    %1550 = vdwg.mxu0
    %v1551 = vmul.f32 %v1533, %v110
    %v1552 = vmul.f32 %v1538, %v112
    %v1553 = vmul.f32 %v1543, %v114
    %v1554 = vmul.f32 %v1548, %v116
    %v1555 = vld [vmem:[#allocation10 + $0x4] sm:$0xf]
    %v1556 = vld [vmem:[#allocation10 + $0xc] sm:$0xf]
    %v1557 = vld [vmem:[#allocation10 + $0x14] sm:$0xf]
    %v1558 = vld [vmem:[#allocation10 + $0x1c] sm:$0xf]
    %v1559 = vld [vmem:[#allocation10 + $0x24] sm:$0xf]
    %v1560 = vld [vmem:[#allocation10 + $0x2c] sm:$0xf]
    %v1561 = vld [vmem:[#allocation10 + $0x34] sm:$0xf]
    %v1562 = vld [vmem:[#allocation10 + $0x3c] sm:$0xf]
    %v1563 = vld [vmem:[#allocation10 + $0x44] sm:$0xf]
    %v1564 = vld [vmem:[#allocation10 + $0x4c] sm:$0xf]
    %v1565 = vld [vmem:[#allocation10 + $0x54] sm:$0xf]
    %v1566 = vld [vmem:[#allocation10 + $0x5c] sm:$0xf]
    %v1567 = vld [vmem:[#allocation10 + $0x64] sm:$0xf]
    %v1568 = vld [vmem:[#allocation10 + $0x6c] sm:$0xf]
    %v1569 = vld [vmem:[#allocation10 + $0x74] sm:$0xf]
    %v1570 = vld [vmem:[#allocation10 + $0x7c] sm:$0xf]
    %v1571 = vunpack.c.l.bf16 %v1555
    %v1572 = vunpack.c.l.bf16 %v1556
    %v1573 = vunpack.c.l.bf16 %v1557
    %v1574 = vunpack.c.l.bf16 %v1558
    %v1575 = vunpack.c.l.bf16 %v1559
    %v1576 = vunpack.c.l.bf16 %v1560
    %v1577 = vunpack.c.l.bf16 %v1561
    %v1578 = vunpack.c.l.bf16 %v1562
    %v1579 = vunpack.c.l.bf16 %v1563
    %v1580 = vunpack.c.l.bf16 %v1564
    %v1581 = vunpack.c.l.bf16 %v1565
    %v1582 = vunpack.c.l.bf16 %v1566
    %v1583 = vunpack.c.l.bf16 %v1567
    %v1584 = vunpack.c.l.bf16 %v1568
    %v1585 = vunpack.c.l.bf16 %v1569
    %v1586 = vunpack.c.l.bf16 %v1570
    %1587 = vmatprep.subr.mxu0 0.0
    %1588 = vmatpush1.msra.mxu0 %v1571
    %1589 = vmatprep.subr.mxu0 0.0
    %1590 = vmatpush1.msra.mxu0 %v1572
    %1591 = vmatprep.subr.mxu0 0.0
    %1592 = vmatpush1.msra.mxu0 %v1573
    %1593 = vmatprep.subr.mxu0 0.0
    %1594 = vmatpush1.msra.mxu0 %v1574
    %1595 = vmatprep.subr.mxu0 0.0
    %1596 = vmatpush1.msra.mxu0 %v1575
    %1597 = vmatprep.subr.mxu0 0.0
    %1598 = vmatpush1.msra.mxu0 %v1576
    %1599 = vmatprep.subr.mxu0 0.0
    %1600 = vmatpush1.msra.mxu0 %v1577
    %1601 = vmatprep.subr.mxu0 0.0
    %1602 = vmatpush1.msra.mxu0 %v1578
    %1603 = vmatprep.subr.mxu0 0.0
    %1604 = vmatpush1.msra.mxu0 %v1579
    %1605 = vmatprep.subr.mxu0 0.0
    %1606 = vmatpush1.msra.mxu0 %v1580
    %1607 = vmatprep.subr.mxu0 0.0
    %1608 = vmatpush1.msra.mxu0 %v1581
    %1609 = vmatprep.subr.mxu0 0.0
    %1610 = vmatpush1.msra.mxu0 %v1582
    %1611 = vmatprep.subr.mxu0 0.0
    %1612 = vmatpush1.msra.mxu0 %v1583
    %1613 = vmatprep.subr.mxu0 0.0
    %1614 = vmatpush1.msra.mxu0 %v1584
    %1615 = vmatprep.subr.mxu0 0.0
    %1616 = vmatpush1.msra.mxu0 %v1585
    %1617 = vmatprep.subr.mxu0 0.0
    %1618 = vmatpush1.msra.mxu0 %v1586
    %1619 = vmatprep.subr.mxu0 0.0
    %1620 = vmatpush1.msra.mxu0 0.0
    %1621 = vmatprep.subr.mxu0 0.0
    %1622 = vmatpush1.msra.mxu0 0.0
    %1623 = vmatprep.subr.mxu0 0.0
    %1624 = vmatpush1.msra.mxu0 0.0
    %1625 = vmatprep.subr.mxu0 0.0
    %1626 = vmatpush1.msra.mxu0 0.0
    %1627 = vmatprep.subr.mxu0 0.0
    %1628 = vmatpush1.msra.mxu0 0.0
    %1629 = vmatprep.subr.mxu0 0.0
    %1630 = vmatpush1.msra.mxu0 0.0
    %1631 = vmatprep.subr.mxu0 0.0
    %1632 = vmatpush1.msra.mxu0 0.0
    %1633 = vmatprep.subr.mxu0 0.0
    %1634 = vmatpush1.msra.mxu0 0.0
    %1635 = vmatprep.subr.mxu0 0.0
    %1636 = vmatpush1.msra.mxu0 0.0
    %1637 = vmatprep.subr.mxu0 0.0
    %1638 = vmatpush1.msra.mxu0 0.0
    %1639 = vmatprep.subr.mxu0 0.0
    %1640 = vmatpush1.msra.mxu0 0.0
    %1641 = vmatprep.subr.mxu0 0.0
    %1642 = vmatpush1.msra.mxu0 0.0
    %1643 = vmatprep.subr.mxu0 0.0
    %1644 = vmatpush1.msra.mxu0 0.0
    %1645 = vmatprep.subr.mxu0 0.0
    %1646 = vmatpush1.msra.mxu0 0.0
    %1647 = vmatprep.subr.mxu0 0.0
    %1648 = vmatpush1.msra.mxu0 0.0
    %1649 = vmatprep.subr.mxu0 0.0
    %1650 = vmatpush1.msra.mxu0 0.0
    %1651 = vmatprep.mubr.f32.mxu0 0.0
    %1652 = vmatmul.mubr.f32.gmra.mrb[0].mxu0 %v1430
    %v1653 = vpop.f32.mrb[0].mxu0
    %v1654 = vadd.f32 0.0, %v1653
    %v1655 = vpop.f32.mrb[0].mxu0
    %1656 = vmatprep.mubr.f32.mxu0 0.0
    %1657 = vmatmul.mubr.f32.gmra.mrb[0].mxu0 %v1431
    %v1658 = vpop.f32.mrb[0].mxu0
    %v1659 = vadd.f32 0.0, %v1658
    %v1660 = vpop.f32.mrb[0].mxu0
    %1661 = vmatprep.mubr.f32.mxu0 0.0
    %1662 = vmatmul.mubr.f32.gmra.mrb[0].mxu0 %v1432
    %v1663 = vpop.f32.mrb[0].mxu0
    %v1664 = vadd.f32 0.0, %v1663
    %v1665 = vpop.f32.mrb[0].mxu0
    %1666 = vmatprep.mubr.f32.mxu0 0.0
    %1667 = vmatmul.mubr.f32.gmra.mrb[0].mxu0 %v1433
    %v1668 = vpop.f32.mrb[0].mxu0
    %v1669 = vadd.f32 0.0, %v1668
    %v1670 = vpop.f32.mrb[0].mxu0
    %1671 = vdwg.mxu0
    %v1672 = vmul.f32 %v1654, %v111
    %v1673 = vmul.f32 %v1659, %v113
    %v1674 = vmul.f32 %v1664, %v115
    %v1675 = vmul.f32 %v1669, %v117
    %v1676 = vadd.f32 %v1551, %v1672
    %v1677 = vadd.f32 %v1552, %v1673
    %v1678 = vadd.f32 %v1553, %v1674
    %v1679 = vadd.f32 %v1554, %v1675
    %1684 = vrot.lane.b32.xlu0 %v1676, 96
    %v1685 = vpop.permute.xlu0 %1684
    %1686 = vrot.lane.b32.xlu0 %v1677, 96
    %v1687 = vpop.permute.xlu0 %1686
    %1688 = vrot.lane.b32.xlu0 %v1678, 96
    %v1689 = vpop.permute.xlu0 %1688
    %1690 = vrot.lane.b32.xlu0 %v1679, 96
    %v1691 = vpop.permute.xlu0 %1690
    %v1696 = vadd.f32 %v1676, %v1685
    %v1697 = vadd.f32 %v1677, %v1687
    %v1698 = vadd.f32 %v1678, %v1689
    %v1699 = vadd.f32 %v1679, %v1691
    %1700 = vrot.lane.b32.xlu0 %v1676, 64
    %v1701 = vpop.permute.xlu0 %1700
    %1702 = vrot.lane.b32.xlu0 %v1677, 64
    %v1703 = vpop.permute.xlu0 %1702
    %1704 = vrot.lane.b32.xlu0 %v1678, 64
    %v1705 = vpop.permute.xlu0 %1704
    %1706 = vrot.lane.b32.xlu0 %v1679, 64
    %v1707 = vpop.permute.xlu0 %1706
    %v1712 = vadd.f32 %v1696, %v1701
    %v1713 = vadd.f32 %v1697, %v1703
    %v1714 = vadd.f32 %v1698, %v1705
    %v1715 = vadd.f32 %v1699, %v1707
    %1716 = vrot.lane.b32.xlu0 %v1676, 32
    %v1717 = vpop.permute.xlu0 %1716
    %1718 = vrot.lane.b32.xlu0 %v1677, 32
    %v1719 = vpop.permute.xlu0 %1718
    %1720 = vrot.lane.b32.xlu0 %v1678, 32
    %v1721 = vpop.permute.xlu0 %1720
    %1722 = vrot.lane.b32.xlu0 %v1679, 32
    %v1723 = vpop.permute.xlu0 %1722
    %v1728 = vadd.f32 %v1712, %v1717
    %v1729 = vadd.f32 %v1713, %v1719
    %v1730 = vadd.f32 %v1714, %v1721
    %v1731 = vadd.f32 %v1715, %v1723
    %v1732 = vtanh.pop %v1728
    %v1733 = vtanh.pop %v1729
    %v1734 = vtanh.pop %v1730
    %v1735 = vtanh.pop %v1731
    %v1736 = vmul.f32 %v1181, %v102
    %v1737 = vmul.f32 %v1183, %v103
    %v1738 = vmul.f32 %v1185, %v104
    %v1739 = vmul.f32 %v1187, %v105
    %v1740 = vsub.f32 1.0, %v1181
    %v1741 = vsub.f32 1.0, %v1183
    %v1742 = vsub.f32 1.0, %v1185
    %v1743 = vsub.f32 1.0, %v1187
    %v1744 = vmul.f32 %v1740, %v1732
    %v1745 = vmul.f32 %v1741, %v1733
    %v1746 = vmul.f32 %v1742, %v1734
    %v1747 = vmul.f32 %v1743, %v1735
    %v1748 = vadd.f32 %v1736, %v1744
    %v1749 = vadd.f32 %v1737, %v1745
    %v1750 = vadd.f32 %v1738, %v1746
    %v1751 = vadd.f32 %v1739, %v1747
    %v1752 = vsel %vm232, %v1748, 0.0
    %v1753 = vsel %vm232, %v1749, 0.0
    %v1754 = vsel %vm232, %v1750, 0.0
    %v1755 = vsel %vm232, %v1751, 0.0
    %1756 = vst [vmem:[#allocation11] sm:$0xff] %v1752
    %1757 = vst [vmem:[#allocation11 + $0x8] sm:$0xff] %v1753
    %1758 = vst [vmem:[#allocation11 + $0x10] sm:$0xff] %v1754
    %1759 = vst [vmem:[#allocation11 + $0x18] sm:$0xff] %v1755
    // Predicated region
    $region54: #{tpu_custom_call.1} parent=1 // pred_check
      _
    $region55: #{tpu_custom_call.1} parent=1 // pred_check_branch
      %1761 = sbr.rel (0) target = $region57
    $region56: #{tpu_custom_call.1} parent=1 // pred_region
      %s1763 = ssub.s32 512, 512
      %1764 = vsyncadd [#allocation4], %s1763
      %s1765 = sshll.u32 [#allocation11], 4
      %s1766 = int_to_ptr.vmem [resolvable:$true] %s1765
      %1771 = dma.vmem_to_hbm [thread:$0]  %s1766, 512, %s8, [#allocation4], 128, 128, 8
    $region57: #{tpu_custom_call.1} parent=1 // pred_fallthru
      _
    // Predicated region
    $region58: #{tpu_custom_call.1} parent=1 // pred_check
      _
    $region59: #{tpu_custom_call.1} parent=1 // pred_check_branch
      %1773 = sbr.rel (0) target = $region61
    $region60: #{tpu_custom_call.1} parent=1 // pred_region
      %1774 = dma.done [#allocation4], 512
    $region61: #{tpu_custom_call.1} parent=1 // pred_fallthru
      _
    %1775 = vsyncpa [#allocation3], 1
    %1776 = vsyncpa [#allocation6], 1
    %1777 = vsyncpa [#allocation9], 1
    %1778 = vsyncpa [#allocation4], 1

</llo_original>
